<compile_context>
chip_gen: v7x
topology: tpu7x:2x2x1
jax: 0.10.0
libtpu: 0.0.40
codegen_flags: <defaults>
</compile_context>

<pallas_src>
import functools

import jax
import jax.numpy as jnp
from jax.experimental import pallas as pl
from jax.experimental.pallas import tpu as pltpu

D = 256                      # pre_channel == mid_channels
NEXP = 3                     # expert_a, expert_b, expert_share
EXP_W = NEXP * D             # 768 packed expert output lanes
GATE_PAD = 128               # gate logits padded to one lane group
TOTAL_W = EXP_W + GATE_PAD   # 896 packed output lanes
BN_EPS = 1e-5


def _round_up(x, m):
    return ((x + m - 1) // m) * m


def _softmax2(l0, l1):
    m = jnp.maximum(l0, l1)
    e0 = jnp.exp(l0 - m)
    e1 = jnp.exp(l1 - m)
    inv = pl.reciprocal(e0 + e1, approx=True)    # EUP slot, ~free next to the VPU work
    return e0 * inv, e1 * inv


def _softmax3(l0, l1, l2):
    m = jnp.maximum(jnp.maximum(l0, l1), l2)
    e0 = jnp.exp(l0 - m)
    e1 = jnp.exp(l1 - m)
    e2 = jnp.exp(l2 - m)
    inv = pl.reciprocal(e0 + e1 + e2, approx=True)
    return e0 * inv, e1 * inv, e2 * inv


# --------------------------- pass 1: BN batch statistics ---------------------------

def stats_kernel(x_ref, we_ref, sum_ref, sumsq_ref):
    t = pl.program_id(0)

    @pl.when(t == 0)
    def _():
        sum_ref[...] = jnp.zeros_like(sum_ref)
        sumsq_ref[...] = jnp.zeros_like(sumsq_ref)

    # Expert-only matmul (gate columns excluded via the BlockSpec view of w_packed).
    # Padded batch rows of x are zero -> their h rows are exactly zero and contribute
    # nothing to sum/sumsq; the real row count is applied in the wrapper.
    h = jnp.dot(x_ref[...], we_ref[...], preferred_element_type=jnp.float32)  # (tile_n, 768)
    sum_ref[...] += jnp.sum(h, axis=0, keepdims=True)
    sumsq_ref[...] += jnp.sum(h * h, axis=0, keepdims=True)


# ----------------------- pass 2: folded BN + ReLU + gates + mix ---------------------

def apply_kernel(x_ref, w_ref, scale_ref, shift_ref, bias_ref,
                 oa_ref, ob_ref, osh_ref):
    # One fused MXU pass over the packed weight: [h_a | h_b | h_share | gate logits]
    y = jnp.dot(x_ref[...], w_ref[...], preferred_element_type=jnp.float32)
    h = y[:, :EXP_W]                                      # (tile_n, 768)

    # BatchNorm folded to a single FMA, then ReLU, for all 3 experts at once.
    e = jnp.maximum(h * scale_ref[...] + shift_ref[...], 0.0)
    ea = e[:, 0:D]
    eb = e[:, D:2 * D]
    es = e[:, 2 * D:3 * D]

    # Gate logits: only the first 7 (of 128 padded) lanes are real.
    g = y[:, EXP_W:EXP_W + 8] + bias_ref[:, :8]
    pa0, pa1 = _softmax2(g[:, 0:1], g[:, 1:2])
    pb0, pb1 = _softmax2(g[:, 2:3], g[:, 3:4])
    ps0, ps1, ps2 = _softmax3(g[:, 4:5], g[:, 5:6], g[:, 6:7])

    oa_ref[...] = (ea * pa0 + es * pa1).astype(oa_ref.dtype)
    ob_ref[...] = (eb * pb0 + es * pb1).astype(ob_ref.dtype)
    osh_ref[...] = (ea * ps0 + eb * ps1 + es * ps2).astype(osh_ref.dtype)


# ------------------------------------ wrapper ---------------------------------------

def init_block(x, w_packed, gamma_p, beta_p, bias_p, *, tile_n=512,
               out_dtype=jnp.float32):
    n = x.shape[0]
    if n == 0:                                            # guard empty batch (BN div-by-zero)
        z = jnp.zeros((0, D), out_dtype)
        return z, z, z

    # tile_n: multiple of 16 (bf16 sublane packing); shrink to cover tiny batches in one tile.
    tile_n = max(16, min(_round_up(tile_n, 16), _round_up(n, 16)))
    n_pad = _round_up(n, tile_n)
    nt = n_pad // tile_n

    if n_pad != n:
        x = jnp.pad(x, ((0, n_pad - n), (0, 0)))
    x = x.astype(w_packed.dtype)                          # bf16 MXU operands, f32 accumulation

    # ---- pass 1: per-feature sum / sum-of-squares (outputs stay VMEM-resident) ----
    s, sq = pl.pallas_call(
        stats_kernel,
        grid=(nt,),
        in_specs=[
            pl.BlockSpec((tile_n, D), lambda t: (t, 0)),          # x, tiled over batch
            pl.BlockSpec((D, EXP_W), lambda t: (0, 0)),           # expert columns of w_packed
        ],
        out_specs=[pl.BlockSpec((1, EXP_W), lambda t: (0, 0))] * 2,
        out_shape=[jax.ShapeDtypeStruct((1, EXP_W), jnp.float32)] * 2,
        compiler_params=pltpu.CompilerParams(
            dimension_semantics=("arbitrary",)),                  # shared accumulator axis
    )(x, w_packed)

    # ---- fold BN (training-mode batch stats, biased variance) into scale/shift ----
    # NOTE: E[h^2]-E[h]^2 form; fine for near-zero-mean activations (Xavier-init weights).
    inv_n = 1.0 / float(n)
    mean = s * inv_n
    var = jnp.maximum(sq * inv_n - mean * mean, 0.0)
    scale = gamma_p * jax.lax.rsqrt(var + BN_EPS)
    shift = beta_p - mean * scale

    # ---- pass 2: independent batch tiles -> megacore-parallel apply pass ----
    oa, ob, osh = pl.pallas_call(
        apply_kernel,
        grid=(nt,),
        in_specs=[
            pl.BlockSpec((tile_n, D), lambda t: (t, 0)),          # x, tiled over batch
            pl.BlockSpec((D, TOTAL_W), lambda t: (0, 0)),         # fused weights (resident)
            pl.BlockSpec((1, EXP_W), lambda t: (0, 0)),           # folded BN scale
            pl.BlockSpec((1, EXP_W), lambda t: (0, 0)),           # folded BN shift
            pl.BlockSpec((1, GATE_PAD), lambda t: (0, 0)),        # packed gate bias
        ],
        out_specs=[pl.BlockSpec((tile_n, D), lambda t: (t, 0))] * 3,
        out_shape=[jax.ShapeDtypeStruct((n_pad, D), out_dtype)] * 3,
        compiler_params=pltpu.CompilerParams(
            dimension_semantics=("parallel",)),                   # tiles independent
    )(x, w_packed, scale, shift, bias_p)

    return oa[:n], ob[:n], osh[:n]


# ----------------------------- parameter helpers ------------------------------------

def make_params(key):
    ks = jax.random.split(key, 12)
    xav = (2.0 / (D + D)) ** 0.5
    # expert Linear weights stored pre-transposed: y = x @ W
    wa = xav * jax.random.normal(ks[0], (D, D), jnp.float32)
    wb = xav * jax.random.normal(ks[1], (D, D), jnp.float32)
    ws = xav * jax.random.normal(ks[2], (D, D), jnp.float32)
    # BatchNorm affine params (rows: expert_a, expert_b, expert_share)
    gamma = 1.0 + 0.1 * jax.random.normal(ks[3], (3, D), jnp.float32)
    beta = 0.05 * jax.random.normal(ks[4], (3, D), jnp.float32)
    # gate Linear weights/biases, true widths (2, 2, 3)
    widths = (2, 2, 3)
    gate_ws, gate_bs = [], []
    for i, w in enumerate(widths):
        std = (2.0 / (D + w)) ** 0.5
        gate_ws.append(std * jax.random.normal(ks[5 + i], (D, w), jnp.float32))
        gate_bs.append(0.01 * jax.random.normal(ks[8 + i], (w,), jnp.float32))
    return wa, wb, ws, gamma, beta, gate_ws, gate_bs


def pack_params(wa, wb, ws, gamma, beta, gate_ws, gate_bs, matmul_dtype=jnp.bfloat16):
    gate_w = jnp.concatenate(gate_ws, axis=1)                          # (256, 7)
    gate_w = jnp.pad(gate_w, ((0, 0), (0, GATE_PAD - gate_w.shape[1])))
    w_packed = jnp.concatenate([wa, wb, ws, gate_w], axis=1).astype(matmul_dtype)  # (256, 896)
    gamma_p = gamma.reshape(1, EXP_W).astype(jnp.float32)
    beta_p = beta.reshape(1, EXP_W).astype(jnp.float32)
    gate_b = jnp.concatenate(gate_bs)                                  # (7,)
    bias_p = jnp.pad(gate_b, (0, GATE_PAD - gate_b.shape[0])).reshape(1, GATE_PAD)
    return w_packed, gamma_p, beta_p, bias_p.astype(jnp.float32)


# ------------------------------- pure-JAX reference ----------------------------------

def reference(x, wa, wb, ws, gamma, beta, gate_ws, gate_bs, matmul_dtype=jnp.bfloat16):
    # Matmul operands rounded to the same bf16 values the kernel feeds the MXU
    # (f32 accumulation); everything else in f32, training-mode BN like PyTorch.
    xm = x.astype(matmul_dtype).astype(jnp.float32)

    def mm(w):
        return xm @ w.astype(matmul_dtype).astype(jnp.float32)

    def branch(w, g, b):
        h = mm(w)
        m = h.mean(0, keepdims=True)
        v = ((h - m) ** 2).mean(0, keepdims=True)
        return jnp.maximum((h - m) / jnp.sqrt(v + BN_EPS) * g + b, 0.0)

    ea = branch(wa, gamma[0:1], beta[0:1])
    eb = branch(wb, gamma[1:2], beta[1:2])
    es = branch(ws, gamma[2:3], beta[2:3])
    pa = jax.nn.softmax(mm(gate_ws[0]) + gate_bs[0], axis=1)
    pb = jax.nn.softmax(mm(gate_ws[1]) + gate_bs[1], axis=1)
    psh = jax.nn.softmax(mm(gate_ws[2]) + gate_bs[2], axis=1)
    oa = ea * pa[:, 0:1] + es * pa[:, 1:2]
    ob = eb * pb[:, 0:1] + es * pb[:, 1:2]
    osh = ea * psh[:, 0:1] + eb * psh[:, 1:2] + es * psh[:, 2:3]
    return oa, ob, osh


if __name__ == "__main__":
    key = jax.random.PRNGKey(0)
    k_x, k_p = jax.random.split(key)

    N = 200            # non-multiple of the tile -> exercises padded-tail handling
    x = jax.random.normal(k_x, (N, D), jnp.float32)
    raw = make_params(k_p)
    packed = pack_params(*raw)
    ra, rb, rsh = reference(x, *raw)

    # Default config (single big tile) and a small-tile config (multi-tile stats accumulation
    # + padded last tile).
    for tn in (512, 64):
        out_a, out_b, out_share = init_block(x, *packed, tile_n=tn)
        jax.block_until_ready((out_a, out_b, out_share))
        assert out_a.shape == (N, D) and out_b.shape == (N, D) and out_share.shape == (N, D)
        assert jnp.allclose(out_a, ra, atol=5e-3, rtol=5e-3), f"out_a mismatch (tile_n={tn})"
        assert jnp.allclose(out_b, rb, atol=5e-3, rtol=5e-3), f"out_b mismatch (tile_n={tn})"
        assert jnp.allclose(out_share, rsh, atol=5e-3, rtol=5e-3), f"out_share mismatch (tile_n={tn})"

    print("KERNEL_OK")
</pallas_src>

<mosaic_0001>
module attributes {stable_mosaic.version = 11 : i64} {
  func.func @stats_kernel(%arg0: i32, %arg1: memref<208x256xbf16, #tpu.memory_space<vmem>>, %arg2: memref<256x768xbf16, #tpu.memory_space<vmem>>, %arg3: memref<1x768xf32, #tpu.memory_space<vmem>>, %arg4: memref<1x768xf32, #tpu.memory_space<vmem>>) attributes {dimension_semantics = [#tpu.dimension_semantics<arbitrary>], iteration_bounds = array<i64: 1>, scalar_prefetch = 0 : i64, scratch_operands = 0 : i64, tpu.core_type = #tpu.core_type<tc>, window_params = [{transform_indices = @transform_0, window_bounds = array<i64: 208, 256>}, {transform_indices = @transform_1, window_bounds = array<i64: 256, 768>}, {pipeline_mode = #tpu.pipeline_mode<synchronous>, transform_indices = @transform_2, window_bounds = array<i64: 1, 768>}, {pipeline_mode = #tpu.pipeline_mode<synchronous>, transform_indices = @transform_3, window_bounds = array<i64: 1, 768>}]} {
    %c0_i32 = arith.constant 0 : i32
    %0 = arith.cmpi eq, %arg0, %c0_i32 : i32
    %1 = arith.extui %0 : i1 to i32
    %c0_i32_0 = arith.constant 0 : i32
    %2 = arith.cmpi ne, %1, %c0_i32_0 : i32
    scf.if %2 {
      %cst_14 = arith.constant 0.000000e+00 : f32
      %17 = vector.broadcast %cst_14 : f32 to vector<1x768xf32>
      %c0_15 = arith.constant 0 : index
      %c0_16 = arith.constant 0 : index
      %18 = vector.load %arg3[%c0_15, %c0_16] : memref<1x768xf32, #tpu.memory_space<vmem>>, vector<1x768xf32>
      tpu.vector_store %arg3[%c0_15, %c0_16], %17 {strides = array<i32>} : memref<1x768xf32, #tpu.memory_space<vmem>>, vector<1x768xf32>,
      %cst_17 = arith.constant 0.000000e+00 : f32
      %19 = vector.broadcast %cst_17 : f32 to vector<1x768xf32>
      %c0_18 = arith.constant 0 : index
      %c0_19 = arith.constant 0 : index
      %20 = vector.load %arg4[%c0_18, %c0_19] : memref<1x768xf32, #tpu.memory_space<vmem>>, vector<1x768xf32>
      tpu.vector_store %arg4[%c0_18, %c0_19], %19 {strides = array<i32>} : memref<1x768xf32, #tpu.memory_space<vmem>>, vector<1x768xf32>,
    } else {
    }
    %c0 = arith.constant 0 : index
    %c0_1 = arith.constant 0 : index
    %3 = vector.load %arg1[%c0, %c0_1] : memref<208x256xbf16, #tpu.memory_space<vmem>>, vector<208x256xbf16>
    %c0_2 = arith.constant 0 : index
    %c0_3 = arith.constant 0 : index
    %4 = vector.load %arg2[%c0_2, %c0_3] : memref<256x768xbf16, #tpu.memory_space<vmem>>, vector<256x768xbf16>
    %cst = arith.constant dense<0.000000e+00> : vector<208x768xf32>
    %5 = tpu.matmul %3, %4, %cst {dimension_numbers = #tpu.dot_dimension_numbers<[1], [0], [0], [1], [0, 0, 1, 1], [], []>} : vector<208x256xbf16>, vector<256x768xbf16>, vector<208x768xf32> -> vector<208x768xf32>
    %c0_4 = arith.constant 0 : index
    %c0_5 = arith.constant 0 : index
    %6 = vector.load %arg3[%c0_4, %c0_5] : memref<1x768xf32, #tpu.memory_space<vmem>>, vector<1x768xf32>
    %cst_6 = arith.constant dense<0.000000e+00> : vector<768xf32>
    %7 = vector.multi_reduction <add>, %5, %cst_6 [0] : vector<208x768xf32> to vector<768xf32>
    %8 = vector.shape_cast %7 : vector<768xf32> to vector<1x768xf32>
    %9 = arith.addf %6, %8 : vector<1x768xf32>
    %c0_7 = arith.constant 0 : index
    %c0_8 = arith.constant 0 : index
    %10 = vector.load %arg3[%c0_7, %c0_8] : memref<1x768xf32, #tpu.memory_space<vmem>>, vector<1x768xf32>
    tpu.vector_store %arg3[%c0_7, %c0_8], %9 {strides = array<i32>} : memref<1x768xf32, #tpu.memory_space<vmem>>, vector<1x768xf32>,
    %c0_9 = arith.constant 0 : index
    %c0_10 = arith.constant 0 : index
    %11 = vector.load %arg4[%c0_9, %c0_10] : memref<1x768xf32, #tpu.memory_space<vmem>>, vector<1x768xf32>
    %12 = arith.mulf %5, %5 : vector<208x768xf32>
    %cst_11 = arith.constant dense<0.000000e+00> : vector<768xf32>
    %13 = vector.multi_reduction <add>, %12, %cst_11 [0] : vector<208x768xf32> to vector<768xf32>
    %14 = vector.shape_cast %13 : vector<768xf32> to vector<1x768xf32>
    %15 = arith.addf %11, %14 : vector<1x768xf32>
    %c0_12 = arith.constant 0 : index
    %c0_13 = arith.constant 0 : index
    %16 = vector.load %arg4[%c0_12, %c0_13] : memref<1x768xf32, #tpu.memory_space<vmem>>, vector<1x768xf32>
    tpu.vector_store %arg4[%c0_12, %c0_13], %15 {strides = array<i32>} : memref<1x768xf32, #tpu.memory_space<vmem>>, vector<1x768xf32>,
    return
  }
  func.func @transform_0(%arg0: i32) -> (i32, i32) {
    %c0_i32 = arith.constant 0 : i32
    %c0_i32_0 = arith.constant 0 : i32
    return %arg0, %c0_i32 : i32, i32
  }
  func.func @transform_1(%arg0: i32) -> (i32, i32) {
    %c0_i32 = arith.constant 0 : i32
    %c0_i32_0 = arith.constant 0 : i32
    %c0_i32_1 = arith.constant 0 : i32
    return %c0_i32, %c0_i32_0 : i32, i32
  }
  func.func @transform_2(%arg0: i32) -> (i32, i32) {
    %c0_i32 = arith.constant 0 : i32
    %c0_i32_0 = arith.constant 0 : i32
    %c0_i32_1 = arith.constant 0 : i32
    return %c0_i32, %c0_i32_0 : i32, i32
  }
  func.func @transform_3(%arg0: i32) -> (i32, i32) {
    %c0_i32 = arith.constant 0 : i32
    %c0_i32_0 = arith.constant 0 : i32
    %c0_i32_1 = arith.constant 0 : i32
    return %c0_i32, %c0_i32_0 : i32, i32
  }
}

</mosaic_0001>

<llo_original>
// kernel: tpu_custom_call.1
$region0: #{tpu_custom_call.1}
  #allocation0 [shape = 'u32[]', space=smem, size = 0x4, offset = 0x4, fixed_abs, tag = 'smem constant byte address 0x4 - core index']
  #allocation1 [shape = 'u32[144,128]{1,0:T(1,128)}', space=vmem, size = 0x12000, scoped, tag = 'internal scratch']
  %s0 = inlined_call_operand.hbm [shape: bf16[208,256], index: 0, kind: input, shape index: {}]
  %s1 = inlined_call_operand.hbm [shape: bf16[256,896], index: 1, kind: input, shape index: {}]
  %s2 = inlined_call_operand.hbm [shape: f32[1,768], index: 2, kind: output, shape index: {0}]
  %s3 = inlined_call_operand.hbm [shape: f32[1,768], index: 3, kind: output, shape index: {1}]
  %4 = xla_tuple %s2, %s3
  %s5 = sld [smem:[#allocation0]]
  $region38: #{tpu_custom_call.1} parent=0
    _
  %s7 = ssub.s32 1, %s5
  %s8 = scalar_select 0, %s7, %s5
  $region1: #{tpu_custom_call.1} parent=0
    #allocation2 [shape = 'u8[106496]{0}', space=vmem, size = 0x1a000, scoped, tag = 'input window, operand 0, single buffered']
    #allocation3 [shape = 's32[1]{0}', space=sflag, size = 0x4, scoped, tag = 'scoped memory for tpu_custom_call.1']
    #allocation4 [shape = 's32[1]{0}', space=sflag, size = 0x4, scoped, tag = 'scoped memory for tpu_custom_call.1']
    #allocation5 [shape = 'u8[393216]{0}', space=vmem, size = 0x60000, scoped, tag = 'input window, operand 1, single buffered']
    #allocation6 [shape = 's32[1]{0}', space=sflag, size = 0x4, scoped, tag = 'scoped memory for tpu_custom_call.1']
    #allocation7 [shape = 'u8[3072]{0}', space=vmem, size = 0xc00, scoped, tag = 'output window, operand 0, single buffered']
    #allocation8 [shape = 'u8[3072]{0}', space=vmem, size = 0xc00, scoped, tag = 'output window, operand 1, single buffered']
    #allocation9 [shape = 's32[1]{0}', space=sflag, size = 0x4, scoped, tag = 'scoped memory for tpu_custom_call.1']
    %9 = vsyncpa [#allocation3], 0
    %10 = vsyncpa [#allocation6], 0
    %11 = vsyncpa [#allocation4], 0
    %12 = vsyncpa [#allocation9], 0
    // Predicated region
    $region2: #{tpu_custom_call.1} parent=1 // pred_check
      _
    $region3: #{tpu_custom_call.1} parent=1 // pred_check_branch
      %14 = sbr.rel (0) target = $region5
    $region4: #{tpu_custom_call.1} parent=1 // pred_region
      %s16 = ssub.s32 3328, 3328
      %17 = vsyncadd [#allocation3], %s16
      %s18 = sshll.u32 [#allocation2], 4
      %s19 = int_to_ptr.vmem [resolvable:$true] %s18
      %24 = dma.hbm_to_vmem [thread:$0]  %s0, 3328, %s19, [#allocation3], 128, 128, 8
    $region5: #{tpu_custom_call.1} parent=1 // pred_fallthru
      _
    // Predicated region
    $region6: #{tpu_custom_call.1} parent=1 // pred_check
      _
    $region7: #{tpu_custom_call.1} parent=1 // pred_check_branch
      %26 = sbr.rel (0) target = $region9
    $region8: #{tpu_custom_call.1} parent=1 // pred_region
      %s28 = ssub.s32 12288, 12288
      %29 = vsyncadd [#allocation6], %s28
      %s30 = sshll.u32 [#allocation5], 4
      %s31 = int_to_ptr.vmem [resolvable:$true] %s30
      %36 = dma.hbm_to_vmem [thread:$0]  %s1, 12288, %s31, [#allocation6], 448, 384, 24
    $region9: #{tpu_custom_call.1} parent=1 // pred_fallthru
      _
    // Predicated region
    $region10: #{tpu_custom_call.1} parent=1 // pred_check
      _
    $region11: #{tpu_custom_call.1} parent=1 // pred_check_branch
      %38 = sbr.rel (0) target = $region13
    $region12: #{tpu_custom_call.1} parent=1 // pred_region
      %39 = dma.done [#allocation3], 3328
    $region13: #{tpu_custom_call.1} parent=1 // pred_fallthru
      _
    // Predicated region
    $region14: #{tpu_custom_call.1} parent=1 // pred_check
      _
    $region15: #{tpu_custom_call.1} parent=1 // pred_check_branch
      %41 = sbr.rel (0) target = $region17
    $region16: #{tpu_custom_call.1} parent=1 // pred_region
      %42 = dma.done [#allocation6], 12288
    $region17: #{tpu_custom_call.1} parent=1 // pred_fallthru
      _
    %p43 = scmp.eq.s32.totalorder 0, 0
    // Predicated region
    $region18: #{tpu_custom_call.1} parent=1 // pred_check
      %p44 = pneg %p43
    $region19: #{tpu_custom_call.1} parent=1 // pred_check_branch
      %46 = sbr.rel (%p44) target = $region21
    $region20: #{tpu_custom_call.1} parent=1 // pred_region
      %v47 = vlaneseq
      %vm48 = vcmp.ge.s32.totalorder %v47, 0
      %vm49 = vcmp.lt.s32.totalorder %v47, 768
      %vm50 = vmand %vm48, %vm49
      %51 = vst.msk [vmem:[#allocation7] sm:$0x3f] %vm50, 0.0
      %52 = vst.msk [vmem:[#allocation8] sm:$0x3f] %vm50, 0.0
    $region21: #{tpu_custom_call.1} parent=1 // pred_fallthru
      _
    %v53 = vld [vmem:[#allocation2] sm:$0xff]
    %v54 = vld [vmem:[#allocation2 + $0x8] sm:$0xff]
    %v55 = vld [vmem:[#allocation2 + $0x10] sm:$0xff]
    %v56 = vld [vmem:[#allocation2 + $0x18] sm:$0xff]
    %v57 = vld [vmem:[#allocation2 + $0x20] sm:$0xff]
    %v58 = vld [vmem:[#allocation2 + $0x28] sm:$0xff]
    %v59 = vld [vmem:[#allocation2 + $0x30] sm:$0xff]
    %v60 = vld [vmem:[#allocation2 + $0x38] sm:$0xff]
    %v61 = vld [vmem:[#allocation2 + $0x40] sm:$0xff]
    %v62 = vld [vmem:[#allocation2 + $0x48] sm:$0xff]
    %v63 = vld [vmem:[#allocation2 + $0x50] sm:$0xff]
    %v64 = vld [vmem:[#allocation2 + $0x58] sm:$0xff]
    %v65 = vld [vmem:[#allocation2 + $0x60] sm:$0xff]
    %v66 = vld [vmem:[#allocation2 + $0x68] sm:$0xff]
    %v67 = vld [vmem:[#allocation2 + $0x70] sm:$0xff]
    %v68 = vld [vmem:[#allocation2 + $0x78] sm:$0xff]
    %v69 = vld [vmem:[#allocation2 + $0x80] sm:$0xff]
    %v70 = vld [vmem:[#allocation2 + $0x88] sm:$0xff]
    %v71 = vld [vmem:[#allocation2 + $0x90] sm:$0xff]
    %v72 = vld [vmem:[#allocation2 + $0x98] sm:$0xff]
    %v73 = vld [vmem:[#allocation2 + $0xa0] sm:$0xff]
    %v74 = vld [vmem:[#allocation2 + $0xa8] sm:$0xff]
    %v75 = vld [vmem:[#allocation2 + $0xb0] sm:$0xff]
    %v76 = vld [vmem:[#allocation2 + $0xb8] sm:$0xff]
    %v77 = vld [vmem:[#allocation2 + $0xc0] sm:$0xff]
    %v78 = vld [vmem:[#allocation2 + $0xc8] sm:$0xff]
    %v79 = vld [vmem:[#allocation5] sm:$0xff]
    %v80 = vld [vmem:[#allocation5 + $0x8] sm:$0xff]
    %v81 = vld [vmem:[#allocation5 + $0x10] sm:$0xff]
    %v82 = vld [vmem:[#allocation5 + $0x18] sm:$0xff]
    %v83 = vld [vmem:[#allocation5 + $0x20] sm:$0xff]
    %v84 = vld [vmem:[#allocation5 + $0x28] sm:$0xff]
    %v85 = vld [vmem:[#allocation5 + $0x30] sm:$0xff]
    %v86 = vld [vmem:[#allocation5 + $0x38] sm:$0xff]
    %v87 = vld [vmem:[#allocation5 + $0x40] sm:$0xff]
    %v88 = vld [vmem:[#allocation5 + $0x48] sm:$0xff]
    %v89 = vld [vmem:[#allocation5 + $0x50] sm:$0xff]
    %v90 = vld [vmem:[#allocation5 + $0x58] sm:$0xff]
    %v91 = vld [vmem:[#allocation5 + $0x60] sm:$0xff]
    %v92 = vld [vmem:[#allocation5 + $0x68] sm:$0xff]
    %v93 = vld [vmem:[#allocation5 + $0x70] sm:$0xff]
    %v94 = vld [vmem:[#allocation5 + $0x78] sm:$0xff]
    %v95 = vld [vmem:[#allocation5 + $0x80] sm:$0xff]
    %v96 = vld [vmem:[#allocation5 + $0x88] sm:$0xff]
    %v97 = vld [vmem:[#allocation5 + $0x90] sm:$0xff]
    %v98 = vld [vmem:[#allocation5 + $0x98] sm:$0xff]
    %v99 = vld [vmem:[#allocation5 + $0xa0] sm:$0xff]
    %v100 = vld [vmem:[#allocation5 + $0xa8] sm:$0xff]
    %v101 = vld [vmem:[#allocation5 + $0xb0] sm:$0xff]
    %v102 = vld [vmem:[#allocation5 + $0xb8] sm:$0xff]
    %v103 = vld [vmem:[#allocation5 + $0xc0] sm:$0xff]
    %v104 = vld [vmem:[#allocation5 + $0xc8] sm:$0xff]
    %v105 = vld [vmem:[#allocation5 + $0xd0] sm:$0xff]
    %v106 = vld [vmem:[#allocation5 + $0xd8] sm:$0xff]
    %v107 = vld [vmem:[#allocation5 + $0xe0] sm:$0xff]
    %v108 = vld [vmem:[#allocation5 + $0xe8] sm:$0xff]
    %v109 = vld [vmem:[#allocation5 + $0xf0] sm:$0xff]
    %v110 = vld [vmem:[#allocation5 + $0xf8] sm:$0xff]
    %v111 = vld [vmem:[#allocation5 + $0x100] sm:$0xff]
    %v112 = vld [vmem:[#allocation5 + $0x108] sm:$0xff]
    %v113 = vld [vmem:[#allocation5 + $0x110] sm:$0xff]
    %v114 = vld [vmem:[#allocation5 + $0x118] sm:$0xff]
    %v115 = vld [vmem:[#allocation5 + $0x120] sm:$0xff]
    %v116 = vld [vmem:[#allocation5 + $0x128] sm:$0xff]
    %v117 = vld [vmem:[#allocation5 + $0x130] sm:$0xff]
    %v118 = vld [vmem:[#allocation5 + $0x138] sm:$0xff]
    %v119 = vld [vmem:[#allocation5 + $0x140] sm:$0xff]
    %v120 = vld [vmem:[#allocation5 + $0x148] sm:$0xff]
    %v121 = vld [vmem:[#allocation5 + $0x150] sm:$0xff]
    %v122 = vld [vmem:[#allocation5 + $0x158] sm:$0xff]
    %v123 = vld [vmem:[#allocation5 + $0x160] sm:$0xff]
    %v124 = vld [vmem:[#allocation5 + $0x168] sm:$0xff]
    %v125 = vld [vmem:[#allocation5 + $0x170] sm:$0xff]
    %v126 = vld [vmem:[#allocation5 + $0x178] sm:$0xff]
    %v127 = vld [vmem:[#allocation5 + $0x180] sm:$0xff]
    %v128 = vld [vmem:[#allocation5 + $0x188] sm:$0xff]
    %v129 = vld [vmem:[#allocation5 + $0x190] sm:$0xff]
    %v130 = vld [vmem:[#allocation5 + $0x198] sm:$0xff]
    %v131 = vld [vmem:[#allocation5 + $0x1a0] sm:$0xff]
    %v132 = vld [vmem:[#allocation5 + $0x1a8] sm:$0xff]
    %v133 = vld [vmem:[#allocation5 + $0x1b0] sm:$0xff]
    %v134 = vld [vmem:[#allocation5 + $0x1b8] sm:$0xff]
    %v135 = vld [vmem:[#allocation5 + $0x1c0] sm:$0xff]
    %v136 = vld [vmem:[#allocation5 + $0x1c8] sm:$0xff]
    %v137 = vld [vmem:[#allocation5 + $0x1d0] sm:$0xff]
    %v138 = vld [vmem:[#allocation5 + $0x1d8] sm:$0xff]
    %v139 = vld [vmem:[#allocation5 + $0x1e0] sm:$0xff]
    %v140 = vld [vmem:[#allocation5 + $0x1e8] sm:$0xff]
    %v141 = vld [vmem:[#allocation5 + $0x1f0] sm:$0xff]
    %v142 = vld [vmem:[#allocation5 + $0x1f8] sm:$0xff]
    %v143 = vld [vmem:[#allocation5 + $0x200] sm:$0xff]
    %v144 = vld [vmem:[#allocation5 + $0x208] sm:$0xff]
    %v145 = vld [vmem:[#allocation5 + $0x210] sm:$0xff]
    %v146 = vld [vmem:[#allocation5 + $0x218] sm:$0xff]
    %v147 = vld [vmem:[#allocation5 + $0x220] sm:$0xff]
    %v148 = vld [vmem:[#allocation5 + $0x228] sm:$0xff]
    %v149 = vld [vmem:[#allocation5 + $0x230] sm:$0xff]
    %v150 = vld [vmem:[#allocation5 + $0x238] sm:$0xff]
    %v151 = vld [vmem:[#allocation5 + $0x240] sm:$0xff]
    %v152 = vld [vmem:[#allocation5 + $0x248] sm:$0xff]
    %v153 = vld [vmem:[#allocation5 + $0x250] sm:$0xff]
    %v154 = vld [vmem:[#allocation5 + $0x258] sm:$0xff]
    %v155 = vld [vmem:[#allocation5 + $0x260] sm:$0xff]
    %v156 = vld [vmem:[#allocation5 + $0x268] sm:$0xff]
    %v157 = vld [vmem:[#allocation5 + $0x270] sm:$0xff]
    %v158 = vld [vmem:[#allocation5 + $0x278] sm:$0xff]
    %v159 = vld [vmem:[#allocation5 + $0x280] sm:$0xff]
    %v160 = vld [vmem:[#allocation5 + $0x288] sm:$0xff]
    %v161 = vld [vmem:[#allocation5 + $0x290] sm:$0xff]
    %v162 = vld [vmem:[#allocation5 + $0x298] sm:$0xff]
    %v163 = vld [vmem:[#allocation5 + $0x2a0] sm:$0xff]
    %v164 = vld [vmem:[#allocation5 + $0x2a8] sm:$0xff]
    %v165 = vld [vmem:[#allocation5 + $0x2b0] sm:$0xff]
    %v166 = vld [vmem:[#allocation5 + $0x2b8] sm:$0xff]
    %v167 = vld [vmem:[#allocation5 + $0x2c0] sm:$0xff]
    %v168 = vld [vmem:[#allocation5 + $0x2c8] sm:$0xff]
    %v169 = vld [vmem:[#allocation5 + $0x2d0] sm:$0xff]
    %v170 = vld [vmem:[#allocation5 + $0x2d8] sm:$0xff]
    %v171 = vld [vmem:[#allocation5 + $0x2e0] sm:$0xff]
    %v172 = vld [vmem:[#allocation5 + $0x2e8] sm:$0xff]
    %v173 = vld [vmem:[#allocation5 + $0x2f0] sm:$0xff]
    %v174 = vld [vmem:[#allocation5 + $0x2f8] sm:$0xff]
    %v201 = vunpack.c.l.b16 %v53
    %v202 = vunpack.c.h.b16 %v53
    %v203 = vunpack.c.l.b16 %v54
    %v204 = vunpack.c.h.b16 %v54
    %v205 = vunpack.c.l.b16 %v55
    %v206 = vunpack.c.h.b16 %v55
    %v207 = vunpack.c.l.b16 %v56
    %v208 = vunpack.c.h.b16 %v56
    %v209 = vunpack.c.l.b16 %v57
    %v210 = vunpack.c.h.b16 %v57
    %v211 = vunpack.c.l.b16 %v58
    %v212 = vunpack.c.h.b16 %v58
    %v213 = vunpack.c.l.b16 %v59
    %v214 = vunpack.c.h.b16 %v59
    %v215 = vunpack.c.l.b16 %v60
    %v216 = vunpack.c.h.b16 %v60
    %v217 = vunpack.c.l.b16 %v61
    %v218 = vunpack.c.h.b16 %v61
    %v219 = vunpack.c.l.b16 %v62
    %v220 = vunpack.c.h.b16 %v62
    %v221 = vunpack.c.l.b16 %v63
    %v222 = vunpack.c.h.b16 %v63
    %v223 = vunpack.c.l.b16 %v64
    %v224 = vunpack.c.h.b16 %v64
    %v225 = vunpack.c.l.b16 %v65
    %v226 = vunpack.c.h.b16 %v65
    %v227 = vunpack.c.l.b16 %v66
    %v228 = vunpack.c.h.b16 %v66
    %v229 = vunpack.c.l.b16 %v67
    %v230 = vunpack.c.h.b16 %v67
    %v231 = vunpack.c.l.b16 %v68
    %v232 = vunpack.c.h.b16 %v68
    %v233 = vunpack.c.l.b16 %v69
    %v234 = vunpack.c.h.b16 %v69
    %v235 = vunpack.c.l.b16 %v70
    %v236 = vunpack.c.h.b16 %v70
    %v237 = vunpack.c.l.b16 %v71
    %v238 = vunpack.c.h.b16 %v71
    %v239 = vunpack.c.l.b16 %v72
    %v240 = vunpack.c.h.b16 %v72
    %v241 = vunpack.c.l.b16 %v73
    %v242 = vunpack.c.h.b16 %v73
    %v243 = vunpack.c.l.b16 %v74
    %v244 = vunpack.c.h.b16 %v74
    %v245 = vunpack.c.l.b16 %v75
    %v246 = vunpack.c.h.b16 %v75
    %v247 = vunpack.c.l.b16 %v76
    %v248 = vunpack.c.h.b16 %v76
    %v249 = vunpack.c.l.b16 %v77
    %v250 = vunpack.c.h.b16 %v77
    %v251 = vunpack.c.l.b16 %v78
    %v252 = vunpack.c.h.b16 %v78
    %v253 = vpack.c.b16 %v203, %v201
    %v254 = vpack.c.b16 %v204, %v202
    %v255 = vpack.c.b16 %v207, %v205
    %v256 = vpack.c.b16 %v208, %v206
    %v257 = vpack.c.b16 %v211, %v209
    %v258 = vpack.c.b16 %v212, %v210
    %v259 = vpack.c.b16 %v215, %v213
    %v260 = vpack.c.b16 %v216, %v214
    %v261 = vpack.c.b16 %v219, %v217
    %v262 = vpack.c.b16 %v220, %v218
    %v263 = vpack.c.b16 %v223, %v221
    %v264 = vpack.c.b16 %v224, %v222
    %v265 = vpack.c.b16 %v227, %v225
    %v266 = vpack.c.b16 %v228, %v226
    %v267 = vpack.c.b16 %v231, %v229
    %v268 = vpack.c.b16 %v232, %v230
    %v269 = vpack.c.b16 %v235, %v233
    %v270 = vpack.c.b16 %v236, %v234
    %v271 = vpack.c.b16 %v239, %v237
    %v272 = vpack.c.b16 %v240, %v238
    %v273 = vpack.c.b16 %v243, %v241
    %v274 = vpack.c.b16 %v244, %v242
    %v275 = vpack.c.b16 %v247, %v245
    %v276 = vpack.c.b16 %v248, %v246
    %v277 = vpack.c.b16 %v251, %v249
    %v278 = vpack.c.b16 %v252, %v250
    %v401 = vunpack.c.l.b16 %v79
    %v402 = vunpack.c.h.b16 %v79
    %v403 = vunpack.c.l.b16 %v80
    %v404 = vunpack.c.h.b16 %v80
    %v405 = vunpack.c.l.b16 %v81
    %v406 = vunpack.c.h.b16 %v81
    %v407 = vunpack.c.l.b16 %v82
    %v408 = vunpack.c.h.b16 %v82
    %v409 = vunpack.c.l.b16 %v83
    %v410 = vunpack.c.h.b16 %v83
    %v411 = vunpack.c.l.b16 %v84
    %v412 = vunpack.c.h.b16 %v84
    %v413 = vunpack.c.l.b16 %v85
    %v414 = vunpack.c.h.b16 %v85
    %v415 = vunpack.c.l.b16 %v86
    %v416 = vunpack.c.h.b16 %v86
    %v417 = vunpack.c.l.b16 %v87
    %v418 = vunpack.c.h.b16 %v87
    %v419 = vunpack.c.l.b16 %v88
    %v420 = vunpack.c.h.b16 %v88
    %v421 = vunpack.c.l.b16 %v89
    %v422 = vunpack.c.h.b16 %v89
    %v423 = vunpack.c.l.b16 %v90
    %v424 = vunpack.c.h.b16 %v90
    %v425 = vunpack.c.l.b16 %v91
    %v426 = vunpack.c.h.b16 %v91
    %v427 = vunpack.c.l.b16 %v92
    %v428 = vunpack.c.h.b16 %v92
    %v429 = vunpack.c.l.b16 %v93
    %v430 = vunpack.c.h.b16 %v93
    %v431 = vunpack.c.l.b16 %v94
    %v432 = vunpack.c.h.b16 %v94
    %v433 = vunpack.c.l.b16 %v95
    %v434 = vunpack.c.h.b16 %v95
    %v435 = vunpack.c.l.b16 %v96
    %v436 = vunpack.c.h.b16 %v96
    %v437 = vunpack.c.l.b16 %v97
    %v438 = vunpack.c.h.b16 %v97
    %v439 = vunpack.c.l.b16 %v98
    %v440 = vunpack.c.h.b16 %v98
    %v441 = vunpack.c.l.b16 %v99
    %v442 = vunpack.c.h.b16 %v99
    %v443 = vunpack.c.l.b16 %v100
    %v444 = vunpack.c.h.b16 %v100
    %v445 = vunpack.c.l.b16 %v101
    %v446 = vunpack.c.h.b16 %v101
    %v447 = vunpack.c.l.b16 %v102
    %v448 = vunpack.c.h.b16 %v102
    %v449 = vunpack.c.l.b16 %v103
    %v450 = vunpack.c.h.b16 %v103
    %v451 = vunpack.c.l.b16 %v104
    %v452 = vunpack.c.h.b16 %v104
    %v453 = vunpack.c.l.b16 %v105
    %v454 = vunpack.c.h.b16 %v105
    %v455 = vunpack.c.l.b16 %v106
    %v456 = vunpack.c.h.b16 %v106
    %v457 = vunpack.c.l.b16 %v107
    %v458 = vunpack.c.h.b16 %v107
    %v459 = vunpack.c.l.b16 %v108
    %v460 = vunpack.c.h.b16 %v108
    %v461 = vunpack.c.l.b16 %v109
    %v462 = vunpack.c.h.b16 %v109
    %v463 = vunpack.c.l.b16 %v110
    %v464 = vunpack.c.h.b16 %v110
    %v465 = vunpack.c.l.b16 %v111
    %v466 = vunpack.c.h.b16 %v111
    %v467 = vunpack.c.l.b16 %v112
    %v468 = vunpack.c.h.b16 %v112
    %v469 = vunpack.c.l.b16 %v113
    %v470 = vunpack.c.h.b16 %v113
    %v471 = vunpack.c.l.b16 %v114
    %v472 = vunpack.c.h.b16 %v114
    %v473 = vunpack.c.l.b16 %v115
    %v474 = vunpack.c.h.b16 %v115
    %v475 = vunpack.c.l.b16 %v116
    %v476 = vunpack.c.h.b16 %v116
    %v477 = vunpack.c.l.b16 %v117
    %v478 = vunpack.c.h.b16 %v117
    %v479 = vunpack.c.l.b16 %v118
    %v480 = vunpack.c.h.b16 %v118
    %v481 = vunpack.c.l.b16 %v119
    %v482 = vunpack.c.h.b16 %v119
    %v483 = vunpack.c.l.b16 %v120
    %v484 = vunpack.c.h.b16 %v120
    %v485 = vunpack.c.l.b16 %v121
    %v486 = vunpack.c.h.b16 %v121
    %v487 = vunpack.c.l.b16 %v122
    %v488 = vunpack.c.h.b16 %v122
    %v489 = vunpack.c.l.b16 %v123
    %v490 = vunpack.c.h.b16 %v123
    %v491 = vunpack.c.l.b16 %v124
    %v492 = vunpack.c.h.b16 %v124
    %v493 = vunpack.c.l.b16 %v125
    %v494 = vunpack.c.h.b16 %v125
    %v495 = vunpack.c.l.b16 %v126
    %v496 = vunpack.c.h.b16 %v126
    %v497 = vunpack.c.l.b16 %v127
    %v498 = vunpack.c.h.b16 %v127
    %v499 = vunpack.c.l.b16 %v128
    %v500 = vunpack.c.h.b16 %v128
    %v501 = vunpack.c.l.b16 %v129
    %v502 = vunpack.c.h.b16 %v129
    %v503 = vunpack.c.l.b16 %v130
    %v504 = vunpack.c.h.b16 %v130
    %v505 = vunpack.c.l.b16 %v131
    %v506 = vunpack.c.h.b16 %v131
    %v507 = vunpack.c.l.b16 %v132
    %v508 = vunpack.c.h.b16 %v132
    %v509 = vunpack.c.l.b16 %v133
    %v510 = vunpack.c.h.b16 %v133
    %v511 = vunpack.c.l.b16 %v134
    %v512 = vunpack.c.h.b16 %v134
    %v513 = vunpack.c.l.b16 %v135
    %v514 = vunpack.c.h.b16 %v135
    %v515 = vunpack.c.l.b16 %v136
    %v516 = vunpack.c.h.b16 %v136
    %v517 = vunpack.c.l.b16 %v137
    %v518 = vunpack.c.h.b16 %v137
    %v519 = vunpack.c.l.b16 %v138
    %v520 = vunpack.c.h.b16 %v138
    %v521 = vunpack.c.l.b16 %v139
    %v522 = vunpack.c.h.b16 %v139
    %v523 = vunpack.c.l.b16 %v140
    %v524 = vunpack.c.h.b16 %v140
    %v525 = vunpack.c.l.b16 %v141
    %v526 = vunpack.c.h.b16 %v141
    %v527 = vunpack.c.l.b16 %v142
    %v528 = vunpack.c.h.b16 %v142
    %v529 = vunpack.c.l.b16 %v143
    %v530 = vunpack.c.h.b16 %v143
    %v531 = vunpack.c.l.b16 %v144
    %v532 = vunpack.c.h.b16 %v144
    %v533 = vunpack.c.l.b16 %v145
    %v534 = vunpack.c.h.b16 %v145
    %v535 = vunpack.c.l.b16 %v146
    %v536 = vunpack.c.h.b16 %v146
    %v537 = vunpack.c.l.b16 %v147
    %v538 = vunpack.c.h.b16 %v147
    %v539 = vunpack.c.l.b16 %v148
    %v540 = vunpack.c.h.b16 %v148
    %v541 = vunpack.c.l.b16 %v149
    %v542 = vunpack.c.h.b16 %v149
    %v543 = vunpack.c.l.b16 %v150
    %v544 = vunpack.c.h.b16 %v150
    %v545 = vunpack.c.l.b16 %v151
    %v546 = vunpack.c.h.b16 %v151
    %v547 = vunpack.c.l.b16 %v152
    %v548 = vunpack.c.h.b16 %v152
    %v549 = vunpack.c.l.b16 %v153
    %v550 = vunpack.c.h.b16 %v153
    %v551 = vunpack.c.l.b16 %v154
    %v552 = vunpack.c.h.b16 %v154
    %v553 = vunpack.c.l.b16 %v155
    %v554 = vunpack.c.h.b16 %v155
    %v555 = vunpack.c.l.b16 %v156
    %v556 = vunpack.c.h.b16 %v156
    %v557 = vunpack.c.l.b16 %v157
    %v558 = vunpack.c.h.b16 %v157
    %v559 = vunpack.c.l.b16 %v158
    %v560 = vunpack.c.h.b16 %v158
    %v561 = vunpack.c.l.b16 %v159
    %v562 = vunpack.c.h.b16 %v159
    %v563 = vunpack.c.l.b16 %v160
    %v564 = vunpack.c.h.b16 %v160
    %v565 = vunpack.c.l.b16 %v161
    %v566 = vunpack.c.h.b16 %v161
    %v567 = vunpack.c.l.b16 %v162
    %v568 = vunpack.c.h.b16 %v162
    %v569 = vunpack.c.l.b16 %v163
    %v570 = vunpack.c.h.b16 %v163
    %v571 = vunpack.c.l.b16 %v164
    %v572 = vunpack.c.h.b16 %v164
    %v573 = vunpack.c.l.b16 %v165
    %v574 = vunpack.c.h.b16 %v165
    %v575 = vunpack.c.l.b16 %v166
    %v576 = vunpack.c.h.b16 %v166
    %v577 = vunpack.c.l.b16 %v167
    %v578 = vunpack.c.h.b16 %v167
    %v579 = vunpack.c.l.b16 %v168
    %v580 = vunpack.c.h.b16 %v168
    %v581 = vunpack.c.l.b16 %v169
    %v582 = vunpack.c.h.b16 %v169
    %v583 = vunpack.c.l.b16 %v170
    %v584 = vunpack.c.h.b16 %v170
    %v585 = vunpack.c.l.b16 %v171
    %v586 = vunpack.c.h.b16 %v171
    %v587 = vunpack.c.l.b16 %v172
    %v588 = vunpack.c.h.b16 %v172
    %v589 = vunpack.c.l.b16 %v173
    %v590 = vunpack.c.h.b16 %v173
    %v591 = vunpack.c.l.b16 %v174
    %v592 = vunpack.c.h.b16 %v174
    %v593 = vpack.c.b16 %v407, %v401
    %v594 = vpack.c.b16 %v408, %v402
    %v595 = vpack.c.b16 %v409, %v403
    %v596 = vpack.c.b16 %v410, %v404
    %v597 = vpack.c.b16 %v411, %v405
    %v598 = vpack.c.b16 %v412, %v406
    %v599 = vpack.c.b16 %v419, %v413
    %v600 = vpack.c.b16 %v420, %v414
    %v601 = vpack.c.b16 %v421, %v415
    %v602 = vpack.c.b16 %v422, %v416
    %v603 = vpack.c.b16 %v423, %v417
    %v604 = vpack.c.b16 %v424, %v418
    %v605 = vpack.c.b16 %v431, %v425
    %v606 = vpack.c.b16 %v432, %v426
    %v607 = vpack.c.b16 %v433, %v427
    %v608 = vpack.c.b16 %v434, %v428
    %v609 = vpack.c.b16 %v435, %v429
    %v610 = vpack.c.b16 %v436, %v430
    %v611 = vpack.c.b16 %v443, %v437
    %v612 = vpack.c.b16 %v444, %v438
    %v613 = vpack.c.b16 %v445, %v439
    %v614 = vpack.c.b16 %v446, %v440
    %v615 = vpack.c.b16 %v447, %v441
    %v616 = vpack.c.b16 %v448, %v442
    %v617 = vpack.c.b16 %v455, %v449
    %v618 = vpack.c.b16 %v456, %v450
    %v619 = vpack.c.b16 %v457, %v451
    %v620 = vpack.c.b16 %v458, %v452
    %v621 = vpack.c.b16 %v459, %v453
    %v622 = vpack.c.b16 %v460, %v454
    %v623 = vpack.c.b16 %v467, %v461
    %v624 = vpack.c.b16 %v468, %v462
    %v625 = vpack.c.b16 %v469, %v463
    %v626 = vpack.c.b16 %v470, %v464
    %v627 = vpack.c.b16 %v471, %v465
    %v628 = vpack.c.b16 %v472, %v466
    %v629 = vpack.c.b16 %v479, %v473
    %v630 = vpack.c.b16 %v480, %v474
    %v631 = vpack.c.b16 %v481, %v475
    %v632 = vpack.c.b16 %v482, %v476
    %v633 = vpack.c.b16 %v483, %v477
    %v634 = vpack.c.b16 %v484, %v478
    %v635 = vpack.c.b16 %v491, %v485
    %v636 = vpack.c.b16 %v492, %v486
    %v637 = vpack.c.b16 %v493, %v487
    %v638 = vpack.c.b16 %v494, %v488
    %v639 = vpack.c.b16 %v495, %v489
    %v640 = vpack.c.b16 %v496, %v490
    %v641 = vpack.c.b16 %v503, %v497
    %v642 = vpack.c.b16 %v504, %v498
    %v643 = vpack.c.b16 %v505, %v499
    %v644 = vpack.c.b16 %v506, %v500
    %v645 = vpack.c.b16 %v507, %v501
    %v646 = vpack.c.b16 %v508, %v502
    %v647 = vpack.c.b16 %v515, %v509
    %v648 = vpack.c.b16 %v516, %v510
    %v649 = vpack.c.b16 %v517, %v511
    %v650 = vpack.c.b16 %v518, %v512
    %v651 = vpack.c.b16 %v519, %v513
    %v652 = vpack.c.b16 %v520, %v514
    %v653 = vpack.c.b16 %v527, %v521
    %v654 = vpack.c.b16 %v528, %v522
    %v655 = vpack.c.b16 %v529, %v523
    %v656 = vpack.c.b16 %v530, %v524
    %v657 = vpack.c.b16 %v531, %v525
    %v658 = vpack.c.b16 %v532, %v526
    %v659 = vpack.c.b16 %v539, %v533
    %v660 = vpack.c.b16 %v540, %v534
    %v661 = vpack.c.b16 %v541, %v535
    %v662 = vpack.c.b16 %v542, %v536
    %v663 = vpack.c.b16 %v543, %v537
    %v664 = vpack.c.b16 %v544, %v538
    %v665 = vpack.c.b16 %v551, %v545
    %v666 = vpack.c.b16 %v552, %v546
    %v667 = vpack.c.b16 %v553, %v547
    %v668 = vpack.c.b16 %v554, %v548
    %v669 = vpack.c.b16 %v555, %v549
    %v670 = vpack.c.b16 %v556, %v550
    %v671 = vpack.c.b16 %v563, %v557
    %v672 = vpack.c.b16 %v564, %v558
    %v673 = vpack.c.b16 %v565, %v559
    %v674 = vpack.c.b16 %v566, %v560
    %v675 = vpack.c.b16 %v567, %v561
    %v676 = vpack.c.b16 %v568, %v562
    %v677 = vpack.c.b16 %v575, %v569
    %v678 = vpack.c.b16 %v576, %v570
    %v679 = vpack.c.b16 %v577, %v571
    %v680 = vpack.c.b16 %v578, %v572
    %v681 = vpack.c.b16 %v579, %v573
    %v682 = vpack.c.b16 %v580, %v574
    %v683 = vpack.c.b16 %v587, %v581
    %v684 = vpack.c.b16 %v588, %v582
    %v685 = vpack.c.b16 %v589, %v583
    %v686 = vpack.c.b16 %v590, %v584
    %v687 = vpack.c.b16 %v591, %v585
    %v688 = vpack.c.b16 %v592, %v586
    %785 = vmatprep.subr.bf16.mxu0 %v594
    %786 = vmatpush1.bf16.msra.mxu0 %v593
    %787 = vmatprep.subr.bf16.mxu0 %v600
    %788 = vmatpush1.bf16.msra.mxu0 %v599
    %789 = vmatprep.subr.bf16.mxu0 %v606
    %790 = vmatpush1.bf16.msra.mxu0 %v605
    %791 = vmatprep.subr.bf16.mxu0 %v612
    %792 = vmatpush1.bf16.msra.mxu0 %v611
    %793 = vmatprep.subr.bf16.mxu0 %v618
    %794 = vmatpush1.bf16.msra.mxu0 %v617
    %795 = vmatprep.subr.bf16.mxu0 %v624
    %796 = vmatpush1.bf16.msra.mxu0 %v623
    %797 = vmatprep.subr.bf16.mxu0 %v630
    %798 = vmatpush1.bf16.msra.mxu0 %v629
    %799 = vmatprep.subr.bf16.mxu0 %v636
    %800 = vmatpush1.bf16.msra.mxu0 %v635
    %801 = vmatprep.subr.bf16.mxu0 %v642
    %802 = vmatpush1.bf16.msra.mxu0 %v641
    %803 = vmatprep.subr.bf16.mxu0 %v648
    %804 = vmatpush1.bf16.msra.mxu0 %v647
    %805 = vmatprep.subr.bf16.mxu0 %v654
    %806 = vmatpush1.bf16.msra.mxu0 %v653
    %807 = vmatprep.subr.bf16.mxu0 %v660
    %808 = vmatpush1.bf16.msra.mxu0 %v659
    %809 = vmatprep.subr.bf16.mxu0 %v666
    %810 = vmatpush1.bf16.msra.mxu0 %v665
    %811 = vmatprep.subr.bf16.mxu0 %v672
    %812 = vmatpush1.bf16.msra.mxu0 %v671
    %813 = vmatprep.subr.bf16.mxu0 %v678
    %814 = vmatpush1.bf16.msra.mxu0 %v677
    %815 = vmatprep.subr.bf16.mxu0 %v684
    %816 = vmatpush1.bf16.msra.mxu0 %v683
    %817 = vmatprep.mubr.bf16.mxu0 %v254
    %818 = vmatmul.mubr.bf16.gmra.mrb[0].mxu0 %v253
    %v819 = vpop.f32.mrb[0].mxu0
    %v820 = vadd.f32 0.0, %v819
    %v821 = vpop.f32.mrb[0].mxu0
    %v822 = vadd.f32 0.0, %v821
    %v823 = vpop.f32.mrb[0].mxu0
    %v824 = vadd.f32 0.0, %v823
    %v825 = vpop.f32.mrb[0].mxu0
    %v826 = vadd.f32 0.0, %v825
    %827 = vmatprep.mubr.bf16.mxu0 %v256
    %828 = vmatmul.mubr.bf16.gmra.mrb[0].mxu0 %v255
    %v829 = vpop.f32.mrb[0].mxu0
    %v830 = vadd.f32 0.0, %v829
    %v831 = vpop.f32.mrb[0].mxu0
    %v832 = vadd.f32 0.0, %v831
    %v833 = vpop.f32.mrb[0].mxu0
    %v834 = vadd.f32 0.0, %v833
    %v835 = vpop.f32.mrb[0].mxu0
    %v836 = vadd.f32 0.0, %v835
    %837 = vmatprep.mubr.bf16.mxu0 %v258
    %838 = vmatmul.mubr.bf16.gmra.mrb[0].mxu0 %v257
    %v839 = vpop.f32.mrb[0].mxu0
    %v840 = vadd.f32 0.0, %v839
    %v841 = vpop.f32.mrb[0].mxu0
    %v842 = vadd.f32 0.0, %v841
    %v843 = vpop.f32.mrb[0].mxu0
    %v844 = vadd.f32 0.0, %v843
    %v845 = vpop.f32.mrb[0].mxu0
    %v846 = vadd.f32 0.0, %v845
    %847 = vmatprep.mubr.bf16.mxu0 %v260
    %848 = vmatmul.mubr.bf16.gmra.mrb[0].mxu0 %v259
    %v849 = vpop.f32.mrb[0].mxu0
    %v850 = vadd.f32 0.0, %v849
    %v851 = vpop.f32.mrb[0].mxu0
    %v852 = vadd.f32 0.0, %v851
    %v853 = vpop.f32.mrb[0].mxu0
    %v854 = vadd.f32 0.0, %v853
    %v855 = vpop.f32.mrb[0].mxu0
    %v856 = vadd.f32 0.0, %v855
    %857 = vmatprep.mubr.bf16.mxu0 %v262
    %858 = vmatmul.mubr.bf16.gmra.mrb[0].mxu0 %v261
    %v859 = vpop.f32.mrb[0].mxu0
    %v860 = vadd.f32 0.0, %v859
    %v861 = vpop.f32.mrb[0].mxu0
    %v862 = vadd.f32 0.0, %v861
    %v863 = vpop.f32.mrb[0].mxu0
    %v864 = vadd.f32 0.0, %v863
    %v865 = vpop.f32.mrb[0].mxu0
    %v866 = vadd.f32 0.0, %v865
    %867 = vmatprep.mubr.bf16.mxu0 %v264
    %868 = vmatmul.mubr.bf16.gmra.mrb[0].mxu0 %v263
    %v869 = vpop.f32.mrb[0].mxu0
    %v870 = vadd.f32 0.0, %v869
    %v871 = vpop.f32.mrb[0].mxu0
    %v872 = vadd.f32 0.0, %v871
    %v873 = vpop.f32.mrb[0].mxu0
    %v874 = vadd.f32 0.0, %v873
    %v875 = vpop.f32.mrb[0].mxu0
    %v876 = vadd.f32 0.0, %v875
    %877 = vmatprep.mubr.bf16.mxu0 %v266
    %878 = vmatmul.mubr.bf16.gmra.mrb[0].mxu0 %v265
    %v879 = vpop.f32.mrb[0].mxu0
    %v880 = vadd.f32 0.0, %v879
    %v881 = vpop.f32.mrb[0].mxu0
    %v882 = vadd.f32 0.0, %v881
    %v883 = vpop.f32.mrb[0].mxu0
    %v884 = vadd.f32 0.0, %v883
    %v885 = vpop.f32.mrb[0].mxu0
    %v886 = vadd.f32 0.0, %v885
    %887 = vmatprep.mubr.bf16.mxu0 %v268
    %888 = vmatmul.mubr.bf16.gmra.mrb[0].mxu0 %v267
    %v889 = vpop.f32.mrb[0].mxu0
    %v890 = vadd.f32 0.0, %v889
    %v891 = vpop.f32.mrb[0].mxu0
    %v892 = vadd.f32 0.0, %v891
    %v893 = vpop.f32.mrb[0].mxu0
    %v894 = vadd.f32 0.0, %v893
    %v895 = vpop.f32.mrb[0].mxu0
    %v896 = vadd.f32 0.0, %v895
    %897 = vmatprep.mubr.bf16.mxu0 %v270
    %898 = vmatmul.mubr.bf16.gmra.mrb[0].mxu0 %v269
    %v899 = vpop.f32.mrb[0].mxu0
    %v900 = vadd.f32 0.0, %v899
    %v901 = vpop.f32.mrb[0].mxu0
    %v902 = vadd.f32 0.0, %v901
    %v903 = vpop.f32.mrb[0].mxu0
    %v904 = vadd.f32 0.0, %v903
    %v905 = vpop.f32.mrb[0].mxu0
    %v906 = vadd.f32 0.0, %v905
    %907 = vmatprep.mubr.bf16.mxu0 %v272
    %908 = vmatmul.mubr.bf16.gmra.mrb[0].mxu0 %v271
    %v909 = vpop.f32.mrb[0].mxu0
    %v910 = vadd.f32 0.0, %v909
    %v911 = vpop.f32.mrb[0].mxu0
    %v912 = vadd.f32 0.0, %v911
    %v913 = vpop.f32.mrb[0].mxu0
    %v914 = vadd.f32 0.0, %v913
    %v915 = vpop.f32.mrb[0].mxu0
    %v916 = vadd.f32 0.0, %v915
    %917 = vmatprep.mubr.bf16.mxu0 %v274
    %918 = vmatmul.mubr.bf16.gmra.mrb[0].mxu0 %v273
    %v919 = vpop.f32.mrb[0].mxu0
    %v920 = vadd.f32 0.0, %v919
    %v921 = vpop.f32.mrb[0].mxu0
    %v922 = vadd.f32 0.0, %v921
    %v923 = vpop.f32.mrb[0].mxu0
    %v924 = vadd.f32 0.0, %v923
    %v925 = vpop.f32.mrb[0].mxu0
    %v926 = vadd.f32 0.0, %v925
    %927 = vmatprep.mubr.bf16.mxu0 %v276
    %928 = vmatmul.mubr.bf16.gmra.mrb[0].mxu0 %v275
    %v929 = vpop.f32.mrb[0].mxu0
    %v930 = vadd.f32 0.0, %v929
    %v931 = vpop.f32.mrb[0].mxu0
    %v932 = vadd.f32 0.0, %v931
    %v933 = vpop.f32.mrb[0].mxu0
    %v934 = vadd.f32 0.0, %v933
    %v935 = vpop.f32.mrb[0].mxu0
    %v936 = vadd.f32 0.0, %v935
    %937 = vmatprep.mubr.bf16.mxu0 %v278
    %938 = vmatmul.mubr.bf16.gmra.mrb[0].mxu0 %v277
    %v939 = vpop.f32.mrb[0].mxu0
    %v940 = vadd.f32 0.0, %v939
    %v941 = vpop.f32.mrb[0].mxu0
    %v942 = vadd.f32 0.0, %v941
    %v943 = vpop.f32.mrb[0].mxu0
    %v944 = vadd.f32 0.0, %v943
    %v945 = vpop.f32.mrb[0].mxu0
    %v946 = vadd.f32 0.0, %v945
    %947 = vdwg.mxu0
    %948 = vmatprep.subr.bf16.mxu0 %v596
    %949 = vmatpush1.bf16.msra.mxu0 %v595
    %950 = vmatprep.subr.bf16.mxu0 %v602
    %951 = vmatpush1.bf16.msra.mxu0 %v601
    %952 = vmatprep.subr.bf16.mxu0 %v608
    %953 = vmatpush1.bf16.msra.mxu0 %v607
    %954 = vmatprep.subr.bf16.mxu0 %v614
    %955 = vmatpush1.bf16.msra.mxu0 %v613
    %956 = vmatprep.subr.bf16.mxu0 %v620
    %957 = vmatpush1.bf16.msra.mxu0 %v619
    %958 = vmatprep.subr.bf16.mxu0 %v626
    %959 = vmatpush1.bf16.msra.mxu0 %v625
    %960 = vmatprep.subr.bf16.mxu0 %v632
    %961 = vmatpush1.bf16.msra.mxu0 %v631
    %962 = vmatprep.subr.bf16.mxu0 %v638
    %963 = vmatpush1.bf16.msra.mxu0 %v637
    %964 = vmatprep.subr.bf16.mxu0 %v644
    %965 = vmatpush1.bf16.msra.mxu0 %v643
    %966 = vmatprep.subr.bf16.mxu0 %v650
    %967 = vmatpush1.bf16.msra.mxu0 %v649
    %968 = vmatprep.subr.bf16.mxu0 %v656
    %969 = vmatpush1.bf16.msra.mxu0 %v655
    %970 = vmatprep.subr.bf16.mxu0 %v662
    %971 = vmatpush1.bf16.msra.mxu0 %v661
    %972 = vmatprep.subr.bf16.mxu0 %v668
    %973 = vmatpush1.bf16.msra.mxu0 %v667
    %974 = vmatprep.subr.bf16.mxu0 %v674
    %975 = vmatpush1.bf16.msra.mxu0 %v673
    %976 = vmatprep.subr.bf16.mxu0 %v680
    %977 = vmatpush1.bf16.msra.mxu0 %v679
    %978 = vmatprep.subr.bf16.mxu0 %v686
    %979 = vmatpush1.bf16.msra.mxu0 %v685
    %980 = vmatprep.mubr.bf16.mxu0 %v254
    %981 = vmatmul.mubr.bf16.gmra.mrb[0].mxu0 %v253
    %v982 = vpop.f32.mrb[0].mxu0
    %v983 = vadd.f32 0.0, %v982
    %v984 = vpop.f32.mrb[0].mxu0
    %v985 = vadd.f32 0.0, %v984
    %v986 = vpop.f32.mrb[0].mxu0
    %v987 = vadd.f32 0.0, %v986
    %v988 = vpop.f32.mrb[0].mxu0
    %v989 = vadd.f32 0.0, %v988
    %990 = vmatprep.mubr.bf16.mxu0 %v256
    %991 = vmatmul.mubr.bf16.gmra.mrb[0].mxu0 %v255
    %v992 = vpop.f32.mrb[0].mxu0
    %v993 = vadd.f32 0.0, %v992
    %v994 = vpop.f32.mrb[0].mxu0
    %v995 = vadd.f32 0.0, %v994
    %v996 = vpop.f32.mrb[0].mxu0
    %v997 = vadd.f32 0.0, %v996
    %v998 = vpop.f32.mrb[0].mxu0
    %v999 = vadd.f32 0.0, %v998
    %1000 = vmatprep.mubr.bf16.mxu0 %v258
    %1001 = vmatmul.mubr.bf16.gmra.mrb[0].mxu0 %v257
    %v1002 = vpop.f32.mrb[0].mxu0
    %v1003 = vadd.f32 0.0, %v1002
    %v1004 = vpop.f32.mrb[0].mxu0
    %v1005 = vadd.f32 0.0, %v1004
    %v1006 = vpop.f32.mrb[0].mxu0
    %v1007 = vadd.f32 0.0, %v1006
    %v1008 = vpop.f32.mrb[0].mxu0
    %v1009 = vadd.f32 0.0, %v1008
    %1010 = vmatprep.mubr.bf16.mxu0 %v260
    %1011 = vmatmul.mubr.bf16.gmra.mrb[0].mxu0 %v259
    %v1012 = vpop.f32.mrb[0].mxu0
    %v1013 = vadd.f32 0.0, %v1012
    %v1014 = vpop.f32.mrb[0].mxu0
    %v1015 = vadd.f32 0.0, %v1014
    %v1016 = vpop.f32.mrb[0].mxu0
    %v1017 = vadd.f32 0.0, %v1016
    %v1018 = vpop.f32.mrb[0].mxu0
    %v1019 = vadd.f32 0.0, %v1018
    %1020 = vmatprep.mubr.bf16.mxu0 %v262
    %1021 = vmatmul.mubr.bf16.gmra.mrb[0].mxu0 %v261
    %v1022 = vpop.f32.mrb[0].mxu0
    %v1023 = vadd.f32 0.0, %v1022
    %v1024 = vpop.f32.mrb[0].mxu0
    %v1025 = vadd.f32 0.0, %v1024
    %v1026 = vpop.f32.mrb[0].mxu0
    %v1027 = vadd.f32 0.0, %v1026
    %v1028 = vpop.f32.mrb[0].mxu0
    %v1029 = vadd.f32 0.0, %v1028
    %1030 = vmatprep.mubr.bf16.mxu0 %v264
    %1031 = vmatmul.mubr.bf16.gmra.mrb[0].mxu0 %v263
    %v1032 = vpop.f32.mrb[0].mxu0
    %v1033 = vadd.f32 0.0, %v1032
    %v1034 = vpop.f32.mrb[0].mxu0
    %v1035 = vadd.f32 0.0, %v1034
    %v1036 = vpop.f32.mrb[0].mxu0
    %v1037 = vadd.f32 0.0, %v1036
    %v1038 = vpop.f32.mrb[0].mxu0
    %v1039 = vadd.f32 0.0, %v1038
    %1040 = vmatprep.mubr.bf16.mxu0 %v266
    %1041 = vmatmul.mubr.bf16.gmra.mrb[0].mxu0 %v265
    %v1042 = vpop.f32.mrb[0].mxu0
    %v1043 = vadd.f32 0.0, %v1042
    %v1044 = vpop.f32.mrb[0].mxu0
    %v1045 = vadd.f32 0.0, %v1044
    %v1046 = vpop.f32.mrb[0].mxu0
    %v1047 = vadd.f32 0.0, %v1046
    %v1048 = vpop.f32.mrb[0].mxu0
    %v1049 = vadd.f32 0.0, %v1048
    %1050 = vmatprep.mubr.bf16.mxu0 %v268
    %1051 = vmatmul.mubr.bf16.gmra.mrb[0].mxu0 %v267
    %v1052 = vpop.f32.mrb[0].mxu0
    %v1053 = vadd.f32 0.0, %v1052
    %v1054 = vpop.f32.mrb[0].mxu0
    %v1055 = vadd.f32 0.0, %v1054
    %v1056 = vpop.f32.mrb[0].mxu0
    %v1057 = vadd.f32 0.0, %v1056
    %v1058 = vpop.f32.mrb[0].mxu0
    %v1059 = vadd.f32 0.0, %v1058
    %1060 = vmatprep.mubr.bf16.mxu0 %v270
    %1061 = vmatmul.mubr.bf16.gmra.mrb[0].mxu0 %v269
    %v1062 = vpop.f32.mrb[0].mxu0
    %v1063 = vadd.f32 0.0, %v1062
    %v1064 = vpop.f32.mrb[0].mxu0
    %v1065 = vadd.f32 0.0, %v1064
    %v1066 = vpop.f32.mrb[0].mxu0
    %v1067 = vadd.f32 0.0, %v1066
    %v1068 = vpop.f32.mrb[0].mxu0
    %v1069 = vadd.f32 0.0, %v1068
    %1070 = vmatprep.mubr.bf16.mxu0 %v272
    %1071 = vmatmul.mubr.bf16.gmra.mrb[0].mxu0 %v271
    %v1072 = vpop.f32.mrb[0].mxu0
    %v1073 = vadd.f32 0.0, %v1072
    %v1074 = vpop.f32.mrb[0].mxu0
    %v1075 = vadd.f32 0.0, %v1074
    %v1076 = vpop.f32.mrb[0].mxu0
    %v1077 = vadd.f32 0.0, %v1076
    %v1078 = vpop.f32.mrb[0].mxu0
    %v1079 = vadd.f32 0.0, %v1078
    %1080 = vmatprep.mubr.bf16.mxu0 %v274
    %1081 = vmatmul.mubr.bf16.gmra.mrb[0].mxu0 %v273
    %v1082 = vpop.f32.mrb[0].mxu0
    %v1083 = vadd.f32 0.0, %v1082
    %v1084 = vpop.f32.mrb[0].mxu0
    %v1085 = vadd.f32 0.0, %v1084
    %v1086 = vpop.f32.mrb[0].mxu0
    %v1087 = vadd.f32 0.0, %v1086
    %v1088 = vpop.f32.mrb[0].mxu0
    %v1089 = vadd.f32 0.0, %v1088
    %1090 = vmatprep.mubr.bf16.mxu0 %v276
    %1091 = vmatmul.mubr.bf16.gmra.mrb[0].mxu0 %v275
    %v1092 = vpop.f32.mrb[0].mxu0
    %v1093 = vadd.f32 0.0, %v1092
    %v1094 = vpop.f32.mrb[0].mxu0
    %v1095 = vadd.f32 0.0, %v1094
    %v1096 = vpop.f32.mrb[0].mxu0
    %v1097 = vadd.f32 0.0, %v1096
    %v1098 = vpop.f32.mrb[0].mxu0
    %v1099 = vadd.f32 0.0, %v1098
    %1100 = vmatprep.mubr.bf16.mxu0 %v278
    %1101 = vmatmul.mubr.bf16.gmra.mrb[0].mxu0 %v277
    %v1102 = vpop.f32.mrb[0].mxu0
    %v1103 = vadd.f32 0.0, %v1102
    %v1104 = vpop.f32.mrb[0].mxu0
    %v1105 = vadd.f32 0.0, %v1104
    %v1106 = vpop.f32.mrb[0].mxu0
    %v1107 = vadd.f32 0.0, %v1106
    %v1108 = vpop.f32.mrb[0].mxu0
    %v1109 = vadd.f32 0.0, %v1108
    %1110 = vdwg.mxu0
    %1111 = vmatprep.subr.bf16.mxu0 %v598
    %1112 = vmatpush1.bf16.msra.mxu0 %v597
    %1113 = vmatprep.subr.bf16.mxu0 %v604
    %1114 = vmatpush1.bf16.msra.mxu0 %v603
    %1115 = vmatprep.subr.bf16.mxu0 %v610
    %1116 = vmatpush1.bf16.msra.mxu0 %v609
    %1117 = vmatprep.subr.bf16.mxu0 %v616
    %1118 = vmatpush1.bf16.msra.mxu0 %v615
    %1119 = vmatprep.subr.bf16.mxu0 %v622
    %1120 = vmatpush1.bf16.msra.mxu0 %v621
    %1121 = vmatprep.subr.bf16.mxu0 %v628
    %1122 = vmatpush1.bf16.msra.mxu0 %v627
    %1123 = vmatprep.subr.bf16.mxu0 %v634
    %1124 = vmatpush1.bf16.msra.mxu0 %v633
    %1125 = vmatprep.subr.bf16.mxu0 %v640
    %1126 = vmatpush1.bf16.msra.mxu0 %v639
    %1127 = vmatprep.subr.bf16.mxu0 %v646
    %1128 = vmatpush1.bf16.msra.mxu0 %v645
    %1129 = vmatprep.subr.bf16.mxu0 %v652
    %1130 = vmatpush1.bf16.msra.mxu0 %v651
    %1131 = vmatprep.subr.bf16.mxu0 %v658
    %1132 = vmatpush1.bf16.msra.mxu0 %v657
    %1133 = vmatprep.subr.bf16.mxu0 %v664
    %1134 = vmatpush1.bf16.msra.mxu0 %v663
    %1135 = vmatprep.subr.bf16.mxu0 %v670
    %1136 = vmatpush1.bf16.msra.mxu0 %v669
    %1137 = vmatprep.subr.bf16.mxu0 %v676
    %1138 = vmatpush1.bf16.msra.mxu0 %v675
    %1139 = vmatprep.subr.bf16.mxu0 %v682
    %1140 = vmatpush1.bf16.msra.mxu0 %v681
    %1141 = vmatprep.subr.bf16.mxu0 %v688
    %1142 = vmatpush1.bf16.msra.mxu0 %v687
    %1143 = vmatprep.mubr.bf16.mxu0 %v254
    %1144 = vmatmul.mubr.bf16.gmra.mrb[0].mxu0 %v253
    %v1145 = vpop.f32.mrb[0].mxu0
    %v1146 = vadd.f32 0.0, %v1145
    %v1147 = vpop.f32.mrb[0].mxu0
    %v1148 = vadd.f32 0.0, %v1147
    %v1149 = vpop.f32.mrb[0].mxu0
    %v1150 = vadd.f32 0.0, %v1149
    %v1151 = vpop.f32.mrb[0].mxu0
    %v1152 = vadd.f32 0.0, %v1151
    %1153 = vmatprep.mubr.bf16.mxu0 %v256
    %1154 = vmatmul.mubr.bf16.gmra.mrb[0].mxu0 %v255
    %v1155 = vpop.f32.mrb[0].mxu0
    %v1156 = vadd.f32 0.0, %v1155
    %v1157 = vpop.f32.mrb[0].mxu0
    %v1158 = vadd.f32 0.0, %v1157
    %v1159 = vpop.f32.mrb[0].mxu0
    %v1160 = vadd.f32 0.0, %v1159
    %v1161 = vpop.f32.mrb[0].mxu0
    %v1162 = vadd.f32 0.0, %v1161
    %1163 = vmatprep.mubr.bf16.mxu0 %v258
    %1164 = vmatmul.mubr.bf16.gmra.mrb[0].mxu0 %v257
    %v1165 = vpop.f32.mrb[0].mxu0
    %v1166 = vadd.f32 0.0, %v1165
    %v1167 = vpop.f32.mrb[0].mxu0
    %v1168 = vadd.f32 0.0, %v1167
    %v1169 = vpop.f32.mrb[0].mxu0
    %v1170 = vadd.f32 0.0, %v1169
    %v1171 = vpop.f32.mrb[0].mxu0
    %v1172 = vadd.f32 0.0, %v1171
    %1173 = vmatprep.mubr.bf16.mxu0 %v260
    %1174 = vmatmul.mubr.bf16.gmra.mrb[0].mxu0 %v259
    %v1175 = vpop.f32.mrb[0].mxu0
    %v1176 = vadd.f32 0.0, %v1175
    %v1177 = vpop.f32.mrb[0].mxu0
    %v1178 = vadd.f32 0.0, %v1177
    %v1179 = vpop.f32.mrb[0].mxu0
    %v1180 = vadd.f32 0.0, %v1179
    %v1181 = vpop.f32.mrb[0].mxu0
    %v1182 = vadd.f32 0.0, %v1181
    %1183 = vmatprep.mubr.bf16.mxu0 %v262
    %1184 = vmatmul.mubr.bf16.gmra.mrb[0].mxu0 %v261
    %v1185 = vpop.f32.mrb[0].mxu0
    %v1186 = vadd.f32 0.0, %v1185
    %v1187 = vpop.f32.mrb[0].mxu0
    %v1188 = vadd.f32 0.0, %v1187
    %v1189 = vpop.f32.mrb[0].mxu0
    %v1190 = vadd.f32 0.0, %v1189
    %v1191 = vpop.f32.mrb[0].mxu0
    %v1192 = vadd.f32 0.0, %v1191
    %1193 = vmatprep.mubr.bf16.mxu0 %v264
    %1194 = vmatmul.mubr.bf16.gmra.mrb[0].mxu0 %v263
    %v1195 = vpop.f32.mrb[0].mxu0
    %v1196 = vadd.f32 0.0, %v1195
    %v1197 = vpop.f32.mrb[0].mxu0
    %v1198 = vadd.f32 0.0, %v1197
    %v1199 = vpop.f32.mrb[0].mxu0
    %v1200 = vadd.f32 0.0, %v1199
    %v1201 = vpop.f32.mrb[0].mxu0
    %v1202 = vadd.f32 0.0, %v1201
    %1203 = vmatprep.mubr.bf16.mxu0 %v266
    %1204 = vmatmul.mubr.bf16.gmra.mrb[0].mxu0 %v265
    %v1205 = vpop.f32.mrb[0].mxu0
    %v1206 = vadd.f32 0.0, %v1205
    %v1207 = vpop.f32.mrb[0].mxu0
    %v1208 = vadd.f32 0.0, %v1207
    %v1209 = vpop.f32.mrb[0].mxu0
    %v1210 = vadd.f32 0.0, %v1209
    %v1211 = vpop.f32.mrb[0].mxu0
    %v1212 = vadd.f32 0.0, %v1211
    %1213 = vmatprep.mubr.bf16.mxu0 %v268
    %1214 = vmatmul.mubr.bf16.gmra.mrb[0].mxu0 %v267
    %v1215 = vpop.f32.mrb[0].mxu0
    %v1216 = vadd.f32 0.0, %v1215
    %v1217 = vpop.f32.mrb[0].mxu0
    %v1218 = vadd.f32 0.0, %v1217
    %v1219 = vpop.f32.mrb[0].mxu0
    %v1220 = vadd.f32 0.0, %v1219
    %v1221 = vpop.f32.mrb[0].mxu0
    %v1222 = vadd.f32 0.0, %v1221
    %1223 = vmatprep.mubr.bf16.mxu0 %v270
    %1224 = vmatmul.mubr.bf16.gmra.mrb[0].mxu0 %v269
    %v1225 = vpop.f32.mrb[0].mxu0
    %v1226 = vadd.f32 0.0, %v1225
    %v1227 = vpop.f32.mrb[0].mxu0
    %v1228 = vadd.f32 0.0, %v1227
    %v1229 = vpop.f32.mrb[0].mxu0
    %v1230 = vadd.f32 0.0, %v1229
    %v1231 = vpop.f32.mrb[0].mxu0
    %v1232 = vadd.f32 0.0, %v1231
    %1233 = vmatprep.mubr.bf16.mxu0 %v272
    %1234 = vmatmul.mubr.bf16.gmra.mrb[0].mxu0 %v271
    %v1235 = vpop.f32.mrb[0].mxu0
    %v1236 = vadd.f32 0.0, %v1235
    %v1237 = vpop.f32.mrb[0].mxu0
    %v1238 = vadd.f32 0.0, %v1237
    %v1239 = vpop.f32.mrb[0].mxu0
    %v1240 = vadd.f32 0.0, %v1239
    %v1241 = vpop.f32.mrb[0].mxu0
    %v1242 = vadd.f32 0.0, %v1241
    %1243 = vmatprep.mubr.bf16.mxu0 %v274
    %1244 = vmatmul.mubr.bf16.gmra.mrb[0].mxu0 %v273
    %v1245 = vpop.f32.mrb[0].mxu0
    %v1246 = vadd.f32 0.0, %v1245
    %v1247 = vpop.f32.mrb[0].mxu0
    %v1248 = vadd.f32 0.0, %v1247
    %v1249 = vpop.f32.mrb[0].mxu0
    %v1250 = vadd.f32 0.0, %v1249
    %v1251 = vpop.f32.mrb[0].mxu0
    %v1252 = vadd.f32 0.0, %v1251
    %1253 = vmatprep.mubr.bf16.mxu0 %v276
    %1254 = vmatmul.mubr.bf16.gmra.mrb[0].mxu0 %v275
    %v1255 = vpop.f32.mrb[0].mxu0
    %v1256 = vadd.f32 0.0, %v1255
    %v1257 = vpop.f32.mrb[0].mxu0
    %v1258 = vadd.f32 0.0, %v1257
    %v1259 = vpop.f32.mrb[0].mxu0
    %v1260 = vadd.f32 0.0, %v1259
    %v1261 = vpop.f32.mrb[0].mxu0
    %v1262 = vadd.f32 0.0, %v1261
    %1263 = vmatprep.mubr.bf16.mxu0 %v278
    %1264 = vmatmul.mubr.bf16.gmra.mrb[0].mxu0 %v277
    %v1265 = vpop.f32.mrb[0].mxu0
    %v1266 = vadd.f32 0.0, %v1265
    %v1267 = vpop.f32.mrb[0].mxu0
    %v1268 = vadd.f32 0.0, %v1267
    %v1269 = vpop.f32.mrb[0].mxu0
    %v1270 = vadd.f32 0.0, %v1269
    %v1271 = vpop.f32.mrb[0].mxu0
    %v1272 = vadd.f32 0.0, %v1271
    %1273 = vdwg.mxu0
    %v1274 = vld [vmem:[#allocation7] sm:$0x3f]
    %v1275 = vadd.f32 %v820, %v824
    %v1276 = vadd.f32 %v1275, %v830
    %v1277 = vadd.f32 %v1276, %v834
    %v1278 = vadd.f32 %v1277, %v840
    %v1279 = vadd.f32 %v1278, %v844
    %v1280 = vadd.f32 %v1279, %v850
    %v1281 = vadd.f32 %v1280, %v854
    %v1282 = vadd.f32 %v1281, %v860
    %v1283 = vadd.f32 %v1282, %v864
    %v1284 = vadd.f32 %v1283, %v870
    %v1285 = vadd.f32 %v1284, %v874
    %v1286 = vadd.f32 %v1285, %v880
    %v1287 = vadd.f32 %v1286, %v884
    %v1288 = vadd.f32 %v1287, %v890
    %v1289 = vadd.f32 %v1288, %v894
    %v1290 = vadd.f32 %v1289, %v900
    %v1291 = vadd.f32 %v1290, %v904
    %v1292 = vadd.f32 %v1291, %v910
    %v1293 = vadd.f32 %v1292, %v914
    %v1294 = vadd.f32 %v1293, %v920
    %v1295 = vadd.f32 %v1294, %v924
    %v1296 = vadd.f32 %v1295, %v930
    %v1297 = vadd.f32 %v1296, %v934
    %v1298 = vadd.f32 %v1297, %v940
    %v1299 = vadd.f32 %v1298, %v944
    %v1300 = vrot.slane %v1299, 4
    %v1301 = vadd.f32 %v1299, %v1300
    %v1302 = vrot.slane %v1301, 2
    %v1303 = vadd.f32 %v1301, %v1302
    %v1304 = vrot.slane %v1303, 1
    %v1305 = vadd.f32 %v1303, %v1304
    %v1306 = vadd.f32 %v822, %v826
    %v1307 = vadd.f32 %v1306, %v832
    %v1308 = vadd.f32 %v1307, %v836
    %v1309 = vadd.f32 %v1308, %v842
    %v1310 = vadd.f32 %v1309, %v846
    %v1311 = vadd.f32 %v1310, %v852
    %v1312 = vadd.f32 %v1311, %v856
    %v1313 = vadd.f32 %v1312, %v862
    %v1314 = vadd.f32 %v1313, %v866
    %v1315 = vadd.f32 %v1314, %v872
    %v1316 = vadd.f32 %v1315, %v876
    %v1317 = vadd.f32 %v1316, %v882
    %v1318 = vadd.f32 %v1317, %v886
    %v1319 = vadd.f32 %v1318, %v892
    %v1320 = vadd.f32 %v1319, %v896
    %v1321 = vadd.f32 %v1320, %v902
    %v1322 = vadd.f32 %v1321, %v906
    %v1323 = vadd.f32 %v1322, %v912
    %v1324 = vadd.f32 %v1323, %v916
    %v1325 = vadd.f32 %v1324, %v922
    %v1326 = vadd.f32 %v1325, %v926
    %v1327 = vadd.f32 %v1326, %v932
    %v1328 = vadd.f32 %v1327, %v936
    %v1329 = vadd.f32 %v1328, %v942
    %v1330 = vadd.f32 %v1329, %v946
    %v1331 = vrot.slane %v1330, 4
    %v1332 = vadd.f32 %v1330, %v1331
    %v1333 = vrot.slane %v1332, 2
    %v1334 = vadd.f32 %v1332, %v1333
    %v1335 = vrot.slane %v1334, 1
    %v1336 = vadd.f32 %v1334, %v1335
    %v1337 = vadd.f32 %v983, %v987
    %v1338 = vadd.f32 %v1337, %v993
    %v1339 = vadd.f32 %v1338, %v997
    %v1340 = vadd.f32 %v1339, %v1003
    %v1341 = vadd.f32 %v1340, %v1007
    %v1342 = vadd.f32 %v1341, %v1013
    %v1343 = vadd.f32 %v1342, %v1017
    %v1344 = vadd.f32 %v1343, %v1023
    %v1345 = vadd.f32 %v1344, %v1027
    %v1346 = vadd.f32 %v1345, %v1033
    %v1347 = vadd.f32 %v1346, %v1037
    %v1348 = vadd.f32 %v1347, %v1043
    %v1349 = vadd.f32 %v1348, %v1047
    %v1350 = vadd.f32 %v1349, %v1053
    %v1351 = vadd.f32 %v1350, %v1057
    %v1352 = vadd.f32 %v1351, %v1063
    %v1353 = vadd.f32 %v1352, %v1067
    %v1354 = vadd.f32 %v1353, %v1073
    %v1355 = vadd.f32 %v1354, %v1077
    %v1356 = vadd.f32 %v1355, %v1083
    %v1357 = vadd.f32 %v1356, %v1087
    %v1358 = vadd.f32 %v1357, %v1093
    %v1359 = vadd.f32 %v1358, %v1097
    %v1360 = vadd.f32 %v1359, %v1103
    %v1361 = vadd.f32 %v1360, %v1107
    %v1362 = vrot.slane %v1361, 4
    %v1363 = vadd.f32 %v1361, %v1362
    %v1364 = vrot.slane %v1363, 2
    %v1365 = vadd.f32 %v1363, %v1364
    %v1366 = vrot.slane %v1365, 1
    %v1367 = vadd.f32 %v1365, %v1366
    %v1368 = vadd.f32 %v985, %v989
    %v1369 = vadd.f32 %v1368, %v995
    %v1370 = vadd.f32 %v1369, %v999
    %v1371 = vadd.f32 %v1370, %v1005
    %v1372 = vadd.f32 %v1371, %v1009
    %v1373 = vadd.f32 %v1372, %v1015
    %v1374 = vadd.f32 %v1373, %v1019
    %v1375 = vadd.f32 %v1374, %v1025
    %v1376 = vadd.f32 %v1375, %v1029
    %v1377 = vadd.f32 %v1376, %v1035
    %v1378 = vadd.f32 %v1377, %v1039
    %v1379 = vadd.f32 %v1378, %v1045
    %v1380 = vadd.f32 %v1379, %v1049
    %v1381 = vadd.f32 %v1380, %v1055
    %v1382 = vadd.f32 %v1381, %v1059
    %v1383 = vadd.f32 %v1382, %v1065
    %v1384 = vadd.f32 %v1383, %v1069
    %v1385 = vadd.f32 %v1384, %v1075
    %v1386 = vadd.f32 %v1385, %v1079
    %v1387 = vadd.f32 %v1386, %v1085
    %v1388 = vadd.f32 %v1387, %v1089
    %v1389 = vadd.f32 %v1388, %v1095
    %v1390 = vadd.f32 %v1389, %v1099
    %v1391 = vadd.f32 %v1390, %v1105
    %v1392 = vadd.f32 %v1391, %v1109
    %v1393 = vrot.slane %v1392, 4
    %v1394 = vadd.f32 %v1392, %v1393
    %v1395 = vrot.slane %v1394, 2
    %v1396 = vadd.f32 %v1394, %v1395
    %v1397 = vrot.slane %v1396, 1
    %v1398 = vadd.f32 %v1396, %v1397
    %v1399 = vadd.f32 %v1146, %v1150
    %v1400 = vadd.f32 %v1399, %v1156
    %v1401 = vadd.f32 %v1400, %v1160
    %v1402 = vadd.f32 %v1401, %v1166
    %v1403 = vadd.f32 %v1402, %v1170
    %v1404 = vadd.f32 %v1403, %v1176
    %v1405 = vadd.f32 %v1404, %v1180
    %v1406 = vadd.f32 %v1405, %v1186
    %v1407 = vadd.f32 %v1406, %v1190
    %v1408 = vadd.f32 %v1407, %v1196
    %v1409 = vadd.f32 %v1408, %v1200
    %v1410 = vadd.f32 %v1409, %v1206
    %v1411 = vadd.f32 %v1410, %v1210
    %v1412 = vadd.f32 %v1411, %v1216
    %v1413 = vadd.f32 %v1412, %v1220
    %v1414 = vadd.f32 %v1413, %v1226
    %v1415 = vadd.f32 %v1414, %v1230
    %v1416 = vadd.f32 %v1415, %v1236
    %v1417 = vadd.f32 %v1416, %v1240
    %v1418 = vadd.f32 %v1417, %v1246
    %v1419 = vadd.f32 %v1418, %v1250
    %v1420 = vadd.f32 %v1419, %v1256
    %v1421 = vadd.f32 %v1420, %v1260
    %v1422 = vadd.f32 %v1421, %v1266
    %v1423 = vadd.f32 %v1422, %v1270
    %v1424 = vrot.slane %v1423, 4
    %v1425 = vadd.f32 %v1423, %v1424
    %v1426 = vrot.slane %v1425, 2
    %v1427 = vadd.f32 %v1425, %v1426
    %v1428 = vrot.slane %v1427, 1
    %v1429 = vadd.f32 %v1427, %v1428
    %v1430 = vadd.f32 %v1148, %v1152
    %v1431 = vadd.f32 %v1430, %v1158
    %v1432 = vadd.f32 %v1431, %v1162
    %v1433 = vadd.f32 %v1432, %v1168
    %v1434 = vadd.f32 %v1433, %v1172
    %v1435 = vadd.f32 %v1434, %v1178
    %v1436 = vadd.f32 %v1435, %v1182
    %v1437 = vadd.f32 %v1436, %v1188
    %v1438 = vadd.f32 %v1437, %v1192
    %v1439 = vadd.f32 %v1438, %v1198
    %v1440 = vadd.f32 %v1439, %v1202
    %v1441 = vadd.f32 %v1440, %v1208
    %v1442 = vadd.f32 %v1441, %v1212
    %v1443 = vadd.f32 %v1442, %v1218
    %v1444 = vadd.f32 %v1443, %v1222
    %v1445 = vadd.f32 %v1444, %v1228
    %v1446 = vadd.f32 %v1445, %v1232
    %v1447 = vadd.f32 %v1446, %v1238
    %v1448 = vadd.f32 %v1447, %v1242
    %v1449 = vadd.f32 %v1448, %v1248
    %v1450 = vadd.f32 %v1449, %v1252
    %v1451 = vadd.f32 %v1450, %v1258
    %v1452 = vadd.f32 %v1451, %v1262
    %v1453 = vadd.f32 %v1452, %v1268
    %v1454 = vadd.f32 %v1453, %v1272
    %v1455 = vrot.slane %v1454, 4
    %v1456 = vadd.f32 %v1454, %v1455
    %v1457 = vrot.slane %v1456, 2
    %v1458 = vadd.f32 %v1456, %v1457
    %v1459 = vrot.slane %v1458, 1
    %v1460 = vadd.f32 %v1458, %v1459
    %v1467 = vcombine.low %v1305, %v1336
    %v1468 = vcombine.low %v1367, %v1398
    %v1469 = vcombine.low %v1429, %v1460
    %v1471 = vunpack.c.l.s4 1966171168
    %v1472 = vunpack.c.0.s8 %v1471
    %v1473 = vlaneseq
    %v1474 = vshrl.u32 %v1473, 7
    %v1475 = vsub.s32 %v1472, %v1474
    %v1476 = vrot.slane %v1467, %v1475
    %v1478 = vunpack.c.l.s4 1966171168
    %v1479 = vunpack.c.0.s8 %v1478
    %v1480 = vlaneseq
    %v1481 = vshrl.u32 %v1480, 7
    %v1482 = vsub.s32 %v1479, %v1481
    %v1483 = vrot.slane %v1468, %v1482
    %v1485 = vunpack.c.l.s4 1966171168
    %v1486 = vunpack.c.0.s8 %v1485
    %v1487 = vlaneseq
    %v1488 = vshrl.u32 %v1487, 7
    %v1489 = vsub.s32 %v1486, %v1488
    %v1490 = vrot.slane %v1469, %v1489
    %v1491 = vcombine.low %v1476, %v1483
    %v1493 = vunpack.c.l.s4 1966171168
    %v1494 = vunpack.c.0.s8 %v1493
    %v1495 = vlaneseq
    %v1496 = vshrl.u32 %v1495, 7
    %v1497 = vsub.s32 %v1494, %v1496
    %v1498 = vrot.slane %v1491, %v1497
    %v1500 = vunpack.c.l.s4 1966171168
    %v1501 = vunpack.c.0.s8 %v1500
    %v1502 = vlaneseq
    %v1503 = vshrl.u32 %v1502, 7
    %v1504 = vsub.s32 %v1501, %v1503
    %v1505 = vrot.slane %v1490, %v1504
    %v1506 = vcombine.low %v1498, %v1505
    %v1508 = vadd.f32 %v1274, %v1506
    %v1509 = vlaneseq
    %vm1510 = vcmp.ge.s32.totalorder %v1509, 0
    %vm1511 = vcmp.lt.s32.totalorder %v1509, 768
    %vm1512 = vmand %vm1510, %vm1511
    %1513 = vst.msk [vmem:[#allocation7] sm:$0x3f] %vm1512, %v1508
    %v1514 = vld [vmem:[#allocation8] sm:$0x3f]
    %v1515 = vmul.f32 %v820, %v820
    %v1516 = vmul.f32 %v822, %v822
    %v1517 = vmul.f32 %v983, %v983
    %v1518 = vmul.f32 %v985, %v985
    %v1519 = vmul.f32 %v1146, %v1146
    %v1520 = vmul.f32 %v1148, %v1148
    %v1521 = vmul.f32 %v824, %v824
    %v1522 = vmul.f32 %v826, %v826
    %v1523 = vmul.f32 %v987, %v987
    %v1524 = vmul.f32 %v989, %v989
    %v1525 = vmul.f32 %v1150, %v1150
    %v1526 = vmul.f32 %v1152, %v1152
    %v1527 = vmul.f32 %v830, %v830
    %v1528 = vmul.f32 %v832, %v832
    %v1529 = vmul.f32 %v993, %v993
    %v1530 = vmul.f32 %v995, %v995
    %v1531 = vmul.f32 %v1156, %v1156
    %v1532 = vmul.f32 %v1158, %v1158
    %v1533 = vmul.f32 %v834, %v834
    %v1534 = vmul.f32 %v836, %v836
    %v1535 = vmul.f32 %v997, %v997
    %v1536 = vmul.f32 %v999, %v999
    %v1537 = vmul.f32 %v1160, %v1160
    %v1538 = vmul.f32 %v1162, %v1162
    %v1539 = vmul.f32 %v840, %v840
    %v1540 = vmul.f32 %v842, %v842
    %v1541 = vmul.f32 %v1003, %v1003
    %v1542 = vmul.f32 %v1005, %v1005
    %v1543 = vmul.f32 %v1166, %v1166
    %v1544 = vmul.f32 %v1168, %v1168
    %v1545 = vmul.f32 %v844, %v844
    %v1546 = vmul.f32 %v846, %v846
    %v1547 = vmul.f32 %v1007, %v1007
    %v1548 = vmul.f32 %v1009, %v1009
    %v1549 = vmul.f32 %v1170, %v1170
    %v1550 = vmul.f32 %v1172, %v1172
    %v1551 = vmul.f32 %v850, %v850
    %v1552 = vmul.f32 %v852, %v852
    %v1553 = vmul.f32 %v1013, %v1013
    %v1554 = vmul.f32 %v1015, %v1015
    %v1555 = vmul.f32 %v1176, %v1176
    %v1556 = vmul.f32 %v1178, %v1178
    %v1557 = vmul.f32 %v854, %v854
    %v1558 = vmul.f32 %v856, %v856
    %v1559 = vmul.f32 %v1017, %v1017
    %v1560 = vmul.f32 %v1019, %v1019
    %v1561 = vmul.f32 %v1180, %v1180
    %v1562 = vmul.f32 %v1182, %v1182
    %v1563 = vmul.f32 %v860, %v860
    %v1564 = vmul.f32 %v862, %v862
    %v1565 = vmul.f32 %v1023, %v1023
    %v1566 = vmul.f32 %v1025, %v1025
    %v1567 = vmul.f32 %v1186, %v1186
    %v1568 = vmul.f32 %v1188, %v1188
    %v1569 = vmul.f32 %v864, %v864
    %v1570 = vmul.f32 %v866, %v866
    %v1571 = vmul.f32 %v1027, %v1027
    %v1572 = vmul.f32 %v1029, %v1029
    %v1573 = vmul.f32 %v1190, %v1190
    %v1574 = vmul.f32 %v1192, %v1192
    %v1575 = vmul.f32 %v870, %v870
    %v1576 = vmul.f32 %v872, %v872
    %v1577 = vmul.f32 %v1033, %v1033
    %v1578 = vmul.f32 %v1035, %v1035
    %v1579 = vmul.f32 %v1196, %v1196
    %v1580 = vmul.f32 %v1198, %v1198
    %v1581 = vmul.f32 %v874, %v874
    %v1582 = vmul.f32 %v876, %v876
    %v1583 = vmul.f32 %v1037, %v1037
    %v1584 = vmul.f32 %v1039, %v1039
    %v1585 = vmul.f32 %v1200, %v1200
    %v1586 = vmul.f32 %v1202, %v1202
    %v1587 = vmul.f32 %v880, %v880
    %v1588 = vmul.f32 %v882, %v882
    %v1589 = vmul.f32 %v1043, %v1043
    %v1590 = vmul.f32 %v1045, %v1045
    %v1591 = vmul.f32 %v1206, %v1206
    %v1592 = vmul.f32 %v1208, %v1208
    %v1593 = vmul.f32 %v884, %v884
    %v1594 = vmul.f32 %v886, %v886
    %v1595 = vmul.f32 %v1047, %v1047
    %v1596 = vmul.f32 %v1049, %v1049
    %v1597 = vmul.f32 %v1210, %v1210
    %v1598 = vmul.f32 %v1212, %v1212
    %v1599 = vmul.f32 %v890, %v890
    %v1600 = vmul.f32 %v892, %v892
    %v1601 = vmul.f32 %v1053, %v1053
    %v1602 = vmul.f32 %v1055, %v1055
    %v1603 = vmul.f32 %v1216, %v1216
    %v1604 = vmul.f32 %v1218, %v1218
    %v1605 = vmul.f32 %v894, %v894
    %v1606 = vmul.f32 %v896, %v896
    %v1607 = vmul.f32 %v1057, %v1057
    %v1608 = vmul.f32 %v1059, %v1059
    %v1609 = vmul.f32 %v1220, %v1220
    %v1610 = vmul.f32 %v1222, %v1222
    %v1611 = vmul.f32 %v900, %v900
    %v1612 = vmul.f32 %v902, %v902
    %v1613 = vmul.f32 %v1063, %v1063
    %v1614 = vmul.f32 %v1065, %v1065
    %v1615 = vmul.f32 %v1226, %v1226
    %v1616 = vmul.f32 %v1228, %v1228
    %v1617 = vmul.f32 %v904, %v904
    %v1618 = vmul.f32 %v906, %v906
    %v1619 = vmul.f32 %v1067, %v1067
    %v1620 = vmul.f32 %v1069, %v1069
    %v1621 = vmul.f32 %v1230, %v1230
    %v1622 = vmul.f32 %v1232, %v1232
    %v1623 = vmul.f32 %v910, %v910
    %v1624 = vmul.f32 %v912, %v912
    %v1625 = vmul.f32 %v1073, %v1073
    %v1626 = vmul.f32 %v1075, %v1075
    %v1627 = vmul.f32 %v1236, %v1236
    %v1628 = vmul.f32 %v1238, %v1238
    %v1629 = vmul.f32 %v914, %v914
    %v1630 = vmul.f32 %v916, %v916
    %v1631 = vmul.f32 %v1077, %v1077
    %v1632 = vmul.f32 %v1079, %v1079
    %v1633 = vmul.f32 %v1240, %v1240
    %v1634 = vmul.f32 %v1242, %v1242
    %v1635 = vmul.f32 %v920, %v920
    %v1636 = vmul.f32 %v922, %v922
    %v1637 = vmul.f32 %v1083, %v1083
    %v1638 = vmul.f32 %v1085, %v1085
    %v1639 = vmul.f32 %v1246, %v1246
    %v1640 = vmul.f32 %v1248, %v1248
    %v1641 = vmul.f32 %v924, %v924
    %v1642 = vmul.f32 %v926, %v926
    %v1643 = vmul.f32 %v1087, %v1087
    %v1644 = vmul.f32 %v1089, %v1089
    %v1645 = vmul.f32 %v1250, %v1250
    %v1646 = vmul.f32 %v1252, %v1252
    %v1647 = vmul.f32 %v930, %v930
    %v1648 = vmul.f32 %v932, %v932
    %v1649 = vmul.f32 %v1093, %v1093
    %v1650 = vmul.f32 %v1095, %v1095
    %v1651 = vmul.f32 %v1256, %v1256
    %v1652 = vmul.f32 %v1258, %v1258
    %v1653 = vmul.f32 %v934, %v934
    %v1654 = vmul.f32 %v936, %v936
    %v1655 = vmul.f32 %v1097, %v1097
    %v1656 = vmul.f32 %v1099, %v1099
    %v1657 = vmul.f32 %v1260, %v1260
    %v1658 = vmul.f32 %v1262, %v1262
    %v1659 = vmul.f32 %v940, %v940
    %v1660 = vmul.f32 %v942, %v942
    %v1661 = vmul.f32 %v1103, %v1103
    %v1662 = vmul.f32 %v1105, %v1105
    %v1663 = vmul.f32 %v1266, %v1266
    %v1664 = vmul.f32 %v1268, %v1268
    %v1665 = vmul.f32 %v944, %v944
    %v1666 = vmul.f32 %v946, %v946
    %v1667 = vmul.f32 %v1107, %v1107
    %v1668 = vmul.f32 %v1109, %v1109
    %v1669 = vmul.f32 %v1270, %v1270
    %v1670 = vmul.f32 %v1272, %v1272
    %v1671 = vadd.f32 %v1515, %v1521
    %v1672 = vadd.f32 %v1671, %v1527
    %v1673 = vadd.f32 %v1672, %v1533
    %v1674 = vadd.f32 %v1673, %v1539
    %v1675 = vadd.f32 %v1674, %v1545
    %v1676 = vadd.f32 %v1675, %v1551
    %v1677 = vadd.f32 %v1676, %v1557
    %v1678 = vadd.f32 %v1677, %v1563
    %v1679 = vadd.f32 %v1678, %v1569
    %v1680 = vadd.f32 %v1679, %v1575
    %v1681 = vadd.f32 %v1680, %v1581
    %v1682 = vadd.f32 %v1681, %v1587
    %v1683 = vadd.f32 %v1682, %v1593
    %v1684 = vadd.f32 %v1683, %v1599
    %v1685 = vadd.f32 %v1684, %v1605
    %v1686 = vadd.f32 %v1685, %v1611
    %v1687 = vadd.f32 %v1686, %v1617
    %v1688 = vadd.f32 %v1687, %v1623
    %v1689 = vadd.f32 %v1688, %v1629
    %v1690 = vadd.f32 %v1689, %v1635
    %v1691 = vadd.f32 %v1690, %v1641
    %v1692 = vadd.f32 %v1691, %v1647
    %v1693 = vadd.f32 %v1692, %v1653
    %v1694 = vadd.f32 %v1693, %v1659
    %v1695 = vadd.f32 %v1694, %v1665
    %v1696 = vrot.slane %v1695, 4
    %v1697 = vadd.f32 %v1695, %v1696
    %v1698 = vrot.slane %v1697, 2
    %v1699 = vadd.f32 %v1697, %v1698
    %v1700 = vrot.slane %v1699, 1
    %v1701 = vadd.f32 %v1699, %v1700
    %v1702 = vadd.f32 %v1516, %v1522
    %v1703 = vadd.f32 %v1702, %v1528
    %v1704 = vadd.f32 %v1703, %v1534
    %v1705 = vadd.f32 %v1704, %v1540
    %v1706 = vadd.f32 %v1705, %v1546
    %v1707 = vadd.f32 %v1706, %v1552
    %v1708 = vadd.f32 %v1707, %v1558
    %v1709 = vadd.f32 %v1708, %v1564
    %v1710 = vadd.f32 %v1709, %v1570
    %v1711 = vadd.f32 %v1710, %v1576
    %v1712 = vadd.f32 %v1711, %v1582
    %v1713 = vadd.f32 %v1712, %v1588
    %v1714 = vadd.f32 %v1713, %v1594
    %v1715 = vadd.f32 %v1714, %v1600
    %v1716 = vadd.f32 %v1715, %v1606
    %v1717 = vadd.f32 %v1716, %v1612
    %v1718 = vadd.f32 %v1717, %v1618
    %v1719 = vadd.f32 %v1718, %v1624
    %v1720 = vadd.f32 %v1719, %v1630
    %v1721 = vadd.f32 %v1720, %v1636
    %v1722 = vadd.f32 %v1721, %v1642
    %v1723 = vadd.f32 %v1722, %v1648
    %v1724 = vadd.f32 %v1723, %v1654
    %v1725 = vadd.f32 %v1724, %v1660
    %v1726 = vadd.f32 %v1725, %v1666
    %v1727 = vrot.slane %v1726, 4
    %v1728 = vadd.f32 %v1726, %v1727
    %v1729 = vrot.slane %v1728, 2
    %v1730 = vadd.f32 %v1728, %v1729
    %v1731 = vrot.slane %v1730, 1
    %v1732 = vadd.f32 %v1730, %v1731
    %v1733 = vadd.f32 %v1517, %v1523
    %v1734 = vadd.f32 %v1733, %v1529
    %v1735 = vadd.f32 %v1734, %v1535
    %v1736 = vadd.f32 %v1735, %v1541
    %v1737 = vadd.f32 %v1736, %v1547
    %v1738 = vadd.f32 %v1737, %v1553
    %v1739 = vadd.f32 %v1738, %v1559
    %v1740 = vadd.f32 %v1739, %v1565
    %v1741 = vadd.f32 %v1740, %v1571
    %v1742 = vadd.f32 %v1741, %v1577
    %v1743 = vadd.f32 %v1742, %v1583
    %v1744 = vadd.f32 %v1743, %v1589
    %v1745 = vadd.f32 %v1744, %v1595
    %v1746 = vadd.f32 %v1745, %v1601
    %v1747 = vadd.f32 %v1746, %v1607
    %v1748 = vadd.f32 %v1747, %v1613
    %v1749 = vadd.f32 %v1748, %v1619
    %v1750 = vadd.f32 %v1749, %v1625
    %v1751 = vadd.f32 %v1750, %v1631
    %v1752 = vadd.f32 %v1751, %v1637
    %v1753 = vadd.f32 %v1752, %v1643
    %v1754 = vadd.f32 %v1753, %v1649
    %v1755 = vadd.f32 %v1754, %v1655
    %v1756 = vadd.f32 %v1755, %v1661
    %v1757 = vadd.f32 %v1756, %v1667
    %v1758 = vrot.slane %v1757, 4
    %v1759 = vadd.f32 %v1757, %v1758
    %v1760 = vrot.slane %v1759, 2
    %v1761 = vadd.f32 %v1759, %v1760
    %v1762 = vrot.slane %v1761, 1
    %v1763 = vadd.f32 %v1761, %v1762
    %v1764 = vadd.f32 %v1518, %v1524
    %v1765 = vadd.f32 %v1764, %v1530
    %v1766 = vadd.f32 %v1765, %v1536
    %v1767 = vadd.f32 %v1766, %v1542
    %v1768 = vadd.f32 %v1767, %v1548
    %v1769 = vadd.f32 %v1768, %v1554
    %v1770 = vadd.f32 %v1769, %v1560
    %v1771 = vadd.f32 %v1770, %v1566
    %v1772 = vadd.f32 %v1771, %v1572
    %v1773 = vadd.f32 %v1772, %v1578
    %v1774 = vadd.f32 %v1773, %v1584
    %v1775 = vadd.f32 %v1774, %v1590
    %v1776 = vadd.f32 %v1775, %v1596
    %v1777 = vadd.f32 %v1776, %v1602
    %v1778 = vadd.f32 %v1777, %v1608
    %v1779 = vadd.f32 %v1778, %v1614
    %v1780 = vadd.f32 %v1779, %v1620
    %v1781 = vadd.f32 %v1780, %v1626
    %v1782 = vadd.f32 %v1781, %v1632
    %v1783 = vadd.f32 %v1782, %v1638
    %v1784 = vadd.f32 %v1783, %v1644
    %v1785 = vadd.f32 %v1784, %v1650
    %v1786 = vadd.f32 %v1785, %v1656
    %v1787 = vadd.f32 %v1786, %v1662
    %v1788 = vadd.f32 %v1787, %v1668
    %v1789 = vrot.slane %v1788, 4
    %v1790 = vadd.f32 %v1788, %v1789
    %v1791 = vrot.slane %v1790, 2
    %v1792 = vadd.f32 %v1790, %v1791
    %v1793 = vrot.slane %v1792, 1
    %v1794 = vadd.f32 %v1792, %v1793
    %v1795 = vadd.f32 %v1519, %v1525
    %v1796 = vadd.f32 %v1795, %v1531
    %v1797 = vadd.f32 %v1796, %v1537
    %v1798 = vadd.f32 %v1797, %v1543
    %v1799 = vadd.f32 %v1798, %v1549
    %v1800 = vadd.f32 %v1799, %v1555
    %v1801 = vadd.f32 %v1800, %v1561
    %v1802 = vadd.f32 %v1801, %v1567
    %v1803 = vadd.f32 %v1802, %v1573
    %v1804 = vadd.f32 %v1803, %v1579
    %v1805 = vadd.f32 %v1804, %v1585
    %v1806 = vadd.f32 %v1805, %v1591
    %v1807 = vadd.f32 %v1806, %v1597
    %v1808 = vadd.f32 %v1807, %v1603
    %v1809 = vadd.f32 %v1808, %v1609
    %v1810 = vadd.f32 %v1809, %v1615
    %v1811 = vadd.f32 %v1810, %v1621
    %v1812 = vadd.f32 %v1811, %v1627
    %v1813 = vadd.f32 %v1812, %v1633
    %v1814 = vadd.f32 %v1813, %v1639
    %v1815 = vadd.f32 %v1814, %v1645
    %v1816 = vadd.f32 %v1815, %v1651
    %v1817 = vadd.f32 %v1816, %v1657
    %v1818 = vadd.f32 %v1817, %v1663
    %v1819 = vadd.f32 %v1818, %v1669
    %v1820 = vrot.slane %v1819, 4
    %v1821 = vadd.f32 %v1819, %v1820
    %v1822 = vrot.slane %v1821, 2
    %v1823 = vadd.f32 %v1821, %v1822
    %v1824 = vrot.slane %v1823, 1
    %v1825 = vadd.f32 %v1823, %v1824
    %v1826 = vadd.f32 %v1520, %v1526
    %v1827 = vadd.f32 %v1826, %v1532
    %v1828 = vadd.f32 %v1827, %v1538
    %v1829 = vadd.f32 %v1828, %v1544
    %v1830 = vadd.f32 %v1829, %v1550
    %v1831 = vadd.f32 %v1830, %v1556
    %v1832 = vadd.f32 %v1831, %v1562
    %v1833 = vadd.f32 %v1832, %v1568
    %v1834 = vadd.f32 %v1833, %v1574
    %v1835 = vadd.f32 %v1834, %v1580
    %v1836 = vadd.f32 %v1835, %v1586
    %v1837 = vadd.f32 %v1836, %v1592
    %v1838 = vadd.f32 %v1837, %v1598
    %v1839 = vadd.f32 %v1838, %v1604
    %v1840 = vadd.f32 %v1839, %v1610
    %v1841 = vadd.f32 %v1840, %v1616
    %v1842 = vadd.f32 %v1841, %v1622
    %v1843 = vadd.f32 %v1842, %v1628
    %v1844 = vadd.f32 %v1843, %v1634
    %v1845 = vadd.f32 %v1844, %v1640
    %v1846 = vadd.f32 %v1845, %v1646
    %v1847 = vadd.f32 %v1846, %v1652
    %v1848 = vadd.f32 %v1847, %v1658
    %v1849 = vadd.f32 %v1848, %v1664
    %v1850 = vadd.f32 %v1849, %v1670
    %v1851 = vrot.slane %v1850, 4
    %v1852 = vadd.f32 %v1850, %v1851
    %v1853 = vrot.slane %v1852, 2
    %v1854 = vadd.f32 %v1852, %v1853
    %v1855 = vrot.slane %v1854, 1
    %v1856 = vadd.f32 %v1854, %v1855
    %v1863 = vcombine.low %v1701, %v1732
    %v1864 = vcombine.low %v1763, %v1794
    %v1865 = vcombine.low %v1825, %v1856
    %v1867 = vunpack.c.l.s4 1966171168
    %v1868 = vunpack.c.0.s8 %v1867
    %v1869 = vlaneseq
    %v1870 = vshrl.u32 %v1869, 7
    %v1871 = vsub.s32 %v1868, %v1870
    %v1872 = vrot.slane %v1863, %v1871
    %v1874 = vunpack.c.l.s4 1966171168
    %v1875 = vunpack.c.0.s8 %v1874
    %v1876 = vlaneseq
    %v1877 = vshrl.u32 %v1876, 7
    %v1878 = vsub.s32 %v1875, %v1877
    %v1879 = vrot.slane %v1864, %v1878
    %v1881 = vunpack.c.l.s4 1966171168
    %v1882 = vunpack.c.0.s8 %v1881
    %v1883 = vlaneseq
    %v1884 = vshrl.u32 %v1883, 7
    %v1885 = vsub.s32 %v1882, %v1884
    %v1886 = vrot.slane %v1865, %v1885
    %v1887 = vcombine.low %v1872, %v1879
    %v1889 = vunpack.c.l.s4 1966171168
    %v1890 = vunpack.c.0.s8 %v1889
    %v1891 = vlaneseq
    %v1892 = vshrl.u32 %v1891, 7
    %v1893 = vsub.s32 %v1890, %v1892
    %v1894 = vrot.slane %v1887, %v1893
    %v1896 = vunpack.c.l.s4 1966171168
    %v1897 = vunpack.c.0.s8 %v1896
    %v1898 = vlaneseq
    %v1899 = vshrl.u32 %v1898, 7
    %v1900 = vsub.s32 %v1897, %v1899
    %v1901 = vrot.slane %v1886, %v1900
    %v1902 = vcombine.low %v1894, %v1901
    %v1904 = vadd.f32 %v1514, %v1902
    %1905 = vst.msk [vmem:[#allocation8] sm:$0x3f] %vm1512, %v1904
    // Predicated region
    $region22: #{tpu_custom_call.1} parent=1 // pred_check
      _
    $region23: #{tpu_custom_call.1} parent=1 // pred_check_branch
      %1907 = sbr.rel (0) target = $region25
    $region24: #{tpu_custom_call.1} parent=1 // pred_region
      %s1909 = ssub.s32 96, 96
      %1910 = vsyncadd [#allocation4], %s1909
      %s1912 = sshll.u32 [#allocation7], 4
      %s1913 = int_to_ptr.vmem [resolvable:$true] %s1912
      %1915 = dma.vmem_to_hbm [thread:$0]  %s1913, 96, %s2, [#allocation4]
    $region25: #{tpu_custom_call.1} parent=1 // pred_fallthru
      _
    // Predicated region
    $region26: #{tpu_custom_call.1} parent=1 // pred_check
      _
    $region27: #{tpu_custom_call.1} parent=1 // pred_check_branch
      %1917 = sbr.rel (0) target = $region29
    $region28: #{tpu_custom_call.1} parent=1 // pred_region
      %s1919 = ssub.s32 96, 96
      %1920 = vsyncadd [#allocation9], %s1919
      %s1922 = sshll.u32 [#allocation8], 4
      %s1923 = int_to_ptr.vmem [resolvable:$true] %s1922
      %1925 = dma.vmem_to_hbm [thread:$0]  %s1923, 96, %s3, [#allocation9]
    $region29: #{tpu_custom_call.1} parent=1 // pred_fallthru
      _
    // Predicated region
    $region30: #{tpu_custom_call.1} parent=1 // pred_check
      _
    $region31: #{tpu_custom_call.1} parent=1 // pred_check_branch
      %1927 = sbr.rel (0) target = $region33
    $region32: #{tpu_custom_call.1} parent=1 // pred_region
      %1928 = dma.done [#allocation4], 96
    $region33: #{tpu_custom_call.1} parent=1 // pred_fallthru
      _
    // Predicated region
    $region34: #{tpu_custom_call.1} parent=1 // pred_check
      _
    $region35: #{tpu_custom_call.1} parent=1 // pred_check_branch
      %1930 = sbr.rel (0) target = $region37
    $region36: #{tpu_custom_call.1} parent=1 // pred_region
      %1931 = dma.done [#allocation9], 96
    $region37: #{tpu_custom_call.1} parent=1 // pred_fallthru
      _
    %1932 = vsyncpa [#allocation3], 1
    %1933 = vsyncpa [#allocation6], 1
    %1934 = vsyncpa [#allocation4], 1
    %1935 = vsyncpa [#allocation9], 1

</llo_original>
